<compile_context>
chip_gen: v5e
topology: v5e:2x2
jax: 0.10.0
libtpu: 0.0.40
codegen_flags: <defaults>
</compile_context>

<pallas_src>
import jax
import jax.numpy as jnp
import numpy as np
from jax import lax
from jax.experimental import pallas as pl
from jax.experimental.pallas import tpu as pltpu

# ---------------------------------------------------------------------------
# Problem sizes (small, consistent with the module's forward semantics)
#   B : batch, L : sequence length, H : xlnet hidden size,
#   P : max_dsp_path_length, H4 = 4*H : encoder output size (self.hidden_size)
# ---------------------------------------------------------------------------
B, L, H, P = 2, 16, 32, 8
H4 = 4 * H
VOCAB, NTYPE = 40, 4

NSEQ = 2 * B               # real batched-LSTM sequences: (head, tail) x batch
NSEQ_PAD = 8               # padded to one f32 sublane tile (8 rows)
HEAD_OFF, TAIL_OFF, PATH_OFF = 0, 8, 16          # tile-aligned gather layout
NIDX_PAD = PATH_OFF + NSEQ_PAD * P               # 16 + 64 = 80 gather rows


# ---------------------------------------------------------------------------
# Single program (grid=()): every operand lives whole in VMEM, no per-step
# pipeline overhead and no repeated weight DMA.
# ---------------------------------------------------------------------------
def _encoder_kernel(hidden_ref, idx_ref, len_ref,
                    w_ih_ref, w_hh_ref, b_lstm_ref, wq_ref, bq_ref,
                    w_lin_ref, b_lin_ref, out_ref):
    hid = hidden_ref[...]              # (B*L, H) f32, already "rolled" via idx
    idx = idx_ref[...]                 # (NIDX_PAD, 1) int32 flat gather indices
    lengths = len_ref[...]             # (NSEQ_PAD, 1) int32 dsp path lengths

    # --- one-hot gather of head/tail rows and both DSP paths in ONE matmul ---
    # (kept in f32: sel is exactly 0/1, gathered values must not be rounded)
    lane = lax.broadcasted_iota(jnp.int32, (NIDX_PAD, B * L), 1)
    sel = (lane == idx).astype(jnp.float32)                          # (80, B*L)
    rep_all = jnp.dot(sel, hid, preferred_element_type=jnp.float32)  # (80, H)

    head = rep_all[HEAD_OFF:HEAD_OFF + B, :]                 # (B, H)
    tail = rep_all[TAIL_OFF:TAIL_OFF + B, :]                 # (B, H)
    rep_seq = rep_all[PATH_OFF:PATH_OFF + NSEQ_PAD * P, :]   # (8*P, H) step-major

    w_ih = w_ih_ref[...]               # (H, 4H) bf16, gate cols [i, f, o, g]
    w_hh = w_hh_ref[...]               # (H, 4H) bf16, gate cols [i, f, o, g]
    b_lstm = b_lstm_ref[...]           # (1, 4H) f32 = b_ih + b_hh, reordered

    # --- hoisted input projection for all P steps of all padded sequences ----
    x_proj = jnp.dot(rep_seq.astype(jnp.bfloat16), w_ih,
                     preferred_element_type=jnp.float32) + b_lstm    # (8P, 4H)

    # --- hoisted attention length mask (single iota compare + select) --------
    step_iota = lax.broadcasted_iota(jnp.int32, (NSEQ_PAD, P), 1)
    mask_fill = jnp.where(step_iota >= lengths,
                          jnp.float32(1.0), jnp.float32(0.0))        # (8, P)

    wq_row = wq_ref[...]               # (1, H)
    bq = bq_ref[...]                   # (1, 1)

    # --- batched single-layer LSTM with fused online-softmax attention -------
    h = jnp.zeros((NSEQ_PAD, H), jnp.float32)
    c = jnp.zeros((NSEQ_PAD, H), jnp.float32)
    m = jnp.zeros((NSEQ_PAD, 1), jnp.float32)       # overwritten at t == 0
    denom = jnp.zeros((NSEQ_PAD, 1), jnp.float32)
    wsum = jnp.zeros((NSEQ_PAD, H), jnp.float32)

    for t in range(P):
        gates = x_proj[t * NSEQ_PAD:(t + 1) * NSEQ_PAD, :] + jnp.dot(
            h.astype(jnp.bfloat16), w_hh, preferred_element_type=jnp.float32)
        sig = jax.nn.sigmoid(gates[:, 0:3 * H])     # one EUP pass: [i | f | o]
        g_g = jnp.tanh(gates[:, 3 * H:4 * H])       # one EUP pass: g
        i_g = sig[:, 0:H]
        f_g = sig[:, H:2 * H]
        o_g = sig[:, 2 * H:3 * H]
        c = f_g * c + i_g * g_g
        h = o_g * jnp.tanh(c)

        # attention score for this step (VPU multiply + lane reduce), masked
        # positions get 1e-9 exactly like the torch code (a modeling quirk:
        # padded steps still receive softmax mass), then online softmax.
        s_t = jnp.sum(h * wq_row, axis=-1, keepdims=True) + bq       # (8, 1)
        m_t = mask_fill[:, t:t + 1]
        s_t = (1.0 - m_t) * s_t + m_t * jnp.float32(1e-9)
        if t == 0:
            m = s_t
            denom = jnp.ones_like(s_t)
            wsum = h
        else:
            m_new = jnp.maximum(m, s_t)
            alpha = jnp.exp(m - m_new)
            e_t = jnp.exp(s_t - m_new)
            denom = alpha * denom + e_t
            wsum = alpha * wsum + e_t * h
            m = m_new

    att = wsum / denom                 # (NSEQ_PAD, H)
    h_att = att[0:B, :]                # (B, H)
    t_att = att[B:2 * B, :]            # (B, H)

    # --- final linear over concat([head, tail, dsp_h, dsp_t]) ----------------
    # four accumulating bf16-operand matmuls (no lane-axis concatenate),
    # producing a lane-dense (B, 4H=128) f32 output.
    w_lin = w_lin_ref[...]             # (4H, 4H) bf16
    out = jnp.dot(head.astype(jnp.bfloat16), w_lin[0:H, :],
                  preferred_element_type=jnp.float32)
    out = out + jnp.dot(tail.astype(jnp.bfloat16), w_lin[H:2 * H, :],
                        preferred_element_type=jnp.float32)
    out = out + jnp.dot(h_att.astype(jnp.bfloat16), w_lin[2 * H:3 * H, :],
                        preferred_element_type=jnp.float32)
    out = out + jnp.dot(t_att.astype(jnp.bfloat16), w_lin[3 * H:4 * H, :],
                        preferred_element_type=jnp.float32)
    out_ref[...] = out + b_lin_ref[...]                     # (B, 4H)


def _reorder_gate_cols(w):
    """PyTorch LSTM gate column order [i, f, g, o] -> kernel order [i, f, o, g]."""
    i, f, g, o = jnp.split(w, 4, axis=-1)
    return jnp.concatenate([i, f, o, g], axis=-1)


def init_params(key):
    ks = jax.random.split(key, 9)
    sc = 0.1
    return {
        'tok_embed': jax.random.normal(ks[0], (VOCAB, H), jnp.float32) * sc,
        'type_embed': jax.random.normal(ks[1], (NTYPE, H), jnp.float32) * sc,
        # nn.LSTM(input=H, hidden=H): weight_ih (4H,H), weight_hh (4H,H), biases (4H,)
        # stored transposed, PyTorch gate order [i, f, g, o]
        'w_ih_t': jax.random.normal(ks[2], (H, H4), jnp.float32) * sc,
        'w_hh_t': jax.random.normal(ks[3], (H, H4), jnp.float32) * sc,
        'b_lstm': jax.random.normal(ks[4], (1, H4), jnp.float32) * sc,   # b_ih + b_hh
        # dsp_query = nn.Linear(H, 1)  (stored as a (1, H) row)
        'wq_row': jax.random.normal(ks[5], (1, H), jnp.float32) * sc,
        'bq': jax.random.normal(ks[6], (1, 1), jnp.float32) * sc,
        # final linear = nn.Linear(4H, 4H), stored transposed
        'w_lin_t': jax.random.normal(ks[7], (H4, H4), jnp.float32) * sc,
        'b_lin': jax.random.normal(ks[8], (1, H4), jnp.float32) * sc,
    }


def forward(seqs, pos1, pos2, token_type_ids, att_mask,
            ent_h_path, ent_t_path, ent_h_length, ent_t_length, params):
    # TODO(synk): the pretrained XLNet transformer backbone has no clean Pallas
    # equivalent here; it is replaced by a deterministic embedding-sum stand-in.
    hidden = (params['tok_embed'][seqs]
              + params['type_embed'][token_type_ids]).astype(jnp.float32)  # (B, L, H)
    hidden_flat = hidden.reshape(B * L, H)

    # The torch in-place loop implements rolled = roll(hidden[b], seq_len[b]),
    # and every downstream use is an indexed read of `rolled`, so fold the roll
    # into the gather indices: rolled[j] == hidden[(j - seq_len) % L].
    seq_len = jnp.sum(att_mask.astype(jnp.int32), axis=-1)              # (B,)
    row_off = jnp.arange(B, dtype=jnp.int32) * L

    head_idx = (pos1[:, 0].astype(jnp.int32) - seq_len) % L + row_off   # (B,)
    tail_idx = (pos2[:, 0].astype(jnp.int32) - seq_len) % L + row_off   # (B,)
    adj_h = (ent_h_path.astype(jnp.int32) - seq_len[:, None]) % L + row_off[:, None]
    adj_t = (ent_t_path.astype(jnp.int32) - seq_len[:, None]) % L + row_off[:, None]

    # 8-row (sublane-tile) aligned gather layout:
    #   rows 0..7   : head rows (B real + padding)
    #   rows 8..15  : tail rows (B real + padding)
    #   rows 16..   : DSP path rows, step-major, NSEQ_PAD rows per step:
    #                 [head branch b=0..B-1 | tail branch b=0..B-1 | padding]
    pad_rows = jnp.zeros((NSEQ_PAD - NSEQ, P), jnp.int32)
    path_blk = jnp.concatenate([adj_h, adj_t, pad_rows], axis=0)        # (8, P)
    path_idx = jnp.transpose(path_blk, (1, 0)).reshape(NSEQ_PAD * P)    # (8P,)
    pad_b = jnp.zeros((NSEQ_PAD - B,), jnp.int32)
    idx = jnp.concatenate([head_idx, pad_b, tail_idx, pad_b, path_idx]
                          ).astype(jnp.int32).reshape(NIDX_PAD, 1)

    lengths = jnp.concatenate(
        [ent_h_length.astype(jnp.int32), ent_t_length.astype(jnp.int32),
         jnp.zeros((NSEQ_PAD - NSEQ,), jnp.int32)]).reshape(NSEQ_PAD, 1)

    # Host-side weight prep (free): gate-column reorder [i,f,g,o]->[i,f,o,g]
    # and bf16 cast of the MXU weight operands (f32 accumulation in-kernel).
    w_ih_bf = _reorder_gate_cols(params['w_ih_t']).astype(jnp.bfloat16)
    w_hh_bf = _reorder_gate_cols(params['w_hh_t']).astype(jnp.bfloat16)
    b_lstm_r = _reorder_gate_cols(params['b_lstm'])                      # f32
    w_lin_bf = params['w_lin_t'].astype(jnp.bfloat16)

    vmem = pl.BlockSpec(memory_space=pltpu.MemorySpace.VMEM)
    out = pl.pallas_call(
        _encoder_kernel,
        out_shape=jax.ShapeDtypeStruct((B, H4), jnp.float32),
        in_specs=[vmem] * 10,
        out_specs=vmem,
    )(hidden_flat, idx, lengths,
      w_ih_bf, w_hh_bf, b_lstm_r,
      params['wq_row'], params['bq'], w_lin_bf, params['b_lin'])
    return out


# ------------------------------ pure-JAX reference --------------------------
# f32 throughout, PyTorch gate order — matches the torch module's math.
def _lstm_attend_ref(rep, length, params):
    h = jnp.zeros((H,), jnp.float32)
    c = jnp.zeros((H,), jnp.float32)
    hs = []
    for t in range(P):
        gates = rep[t] @ params['w_ih_t'] + h @ params['w_hh_t'] + params['b_lstm'][0]
        i_g = jax.nn.sigmoid(gates[0:H])
        f_g = jax.nn.sigmoid(gates[H:2 * H])
        g_g = jnp.tanh(gates[2 * H:3 * H])
        o_g = jax.nn.sigmoid(gates[3 * H:4 * H])
        c = f_g * c + i_g * g_g
        h = o_g * jnp.tanh(c)
        hs.append(h)
    seq_h = jnp.stack(hs, axis=0)
    score = seq_h @ params['wq_row'][0] + params['bq'][0, 0]
    score = jnp.where(jnp.arange(P) >= length, 1e-9, score)
    dist = jax.nn.softmax(score)
    return dist @ seq_h


def reference(seqs, pos1, pos2, token_type_ids, att_mask,
              path_h, path_t, len_h, len_t, params):
    hidden = params['tok_embed'][seqs] + params['type_embed'][token_type_ids]
    seq_len = np.asarray(att_mask).sum(-1)
    outs = []
    for b in range(B):
        rolled = jnp.roll(hidden[b], int(seq_len[b]), axis=0)
        head = rolled[int(pos1[b, 0])]
        tail = rolled[int(pos2[b, 0])]
        rep_h = rolled[np.asarray(path_h[b])]
        rep_t = rolled[np.asarray(path_t[b])]
        h_att = _lstm_attend_ref(rep_h, int(len_h[b]), params)
        t_att = _lstm_attend_ref(rep_t, int(len_t[b]), params)
        rep = jnp.concatenate([head, tail, h_att, t_att])
        outs.append(rep @ params['w_lin_t'] + params['b_lin'][0])
    return jnp.stack(outs)


if __name__ == "__main__":
    key = jax.random.PRNGKey(0)
    k_par, k_seq, k_tt, k_ph, k_pt = jax.random.split(key, 5)
    params = init_params(k_par)

    seqs = jax.random.randint(k_seq, (B, L), 0, VOCAB, dtype=jnp.int32)
    token_type_ids = jax.random.randint(k_tt, (B, L), 0, NTYPE, dtype=jnp.int32)

    # XLNet-style padding at the front: att_mask is 1 on the LAST seq_len slots.
    seq_len = np.array([10, 16], dtype=np.int32)
    att_mask_np = np.zeros((B, L), dtype=np.int32)
    for b in range(B):
        att_mask_np[b, L - seq_len[b]:] = 1
    att_mask = jnp.asarray(att_mask_np)

    pos1 = jnp.array([[2], [5]], dtype=jnp.int32)
    pos2 = jnp.array([[7], [11]], dtype=jnp.int32)

    ent_h_path = jax.random.randint(k_ph, (B, P), 0, L, dtype=jnp.int32)
    ent_t_path = jax.random.randint(k_pt, (B, P), 0, L, dtype=jnp.int32)
    ent_h_length = jnp.array([5, 8], dtype=jnp.int32)
    ent_t_length = jnp.array([3, 6], dtype=jnp.int32)

    out = forward(seqs, pos1, pos2, token_type_ids, att_mask,
                  ent_h_path, ent_t_path, ent_h_length, ent_t_length, params)
    out = jax.block_until_ready(out)

    ref = reference(seqs, pos1, pos2, token_type_ids, att_mask,
                    ent_h_path, ent_t_path, ent_h_length, ent_t_length, params)
    # Tolerance covers bf16 MXU operands (f32 accumulation) through the
    # P=8-step recurrence; the gather and all elementwise math stay f32.
    np.testing.assert_allclose(np.asarray(out), np.asarray(ref),
                               rtol=2e-2, atol=2e-2)
    print("KERNEL_OK")
</pallas_src>

<mosaic_0001>
module attributes {stable_mosaic.version = 11 : i64} {
  func.func @_encoder_kernel(%arg0: memref<32x32xf32, #tpu.memory_space<vmem>>, %arg1: memref<80x1xi32, #tpu.memory_space<vmem>>, %arg2: memref<8x1xi32, #tpu.memory_space<vmem>>, %arg3: memref<32x128xbf16, #tpu.memory_space<vmem>>, %arg4: memref<32x128xbf16, #tpu.memory_space<vmem>>, %arg5: memref<1x128xf32, #tpu.memory_space<vmem>>, %arg6: memref<1x32xf32, #tpu.memory_space<vmem>>, %arg7: memref<1x1xf32, #tpu.memory_space<vmem>>, %arg8: memref<128x128xbf16, #tpu.memory_space<vmem>>, %arg9: memref<1x128xf32, #tpu.memory_space<vmem>>, %arg10: memref<2x128xf32, #tpu.memory_space<vmem>>) attributes {dimension_semantics = [], scalar_prefetch = 0 : i64, scratch_operands = 0 : i64, tpu.core_type = #tpu.core_type<tc>} {
    %c0 = arith.constant 0 : index
    %c0_0 = arith.constant 0 : index
    %0 = vector.load %arg0[%c0, %c0_0] : memref<32x32xf32, #tpu.memory_space<vmem>>, vector<32x32xf32>
    %c0_1 = arith.constant 0 : index
    %c0_2 = arith.constant 0 : index
    %1 = vector.load %arg1[%c0_1, %c0_2] : memref<80x1xi32, #tpu.memory_space<vmem>>, vector<80x1xi32>
    %c0_3 = arith.constant 0 : index
    %c0_4 = arith.constant 0 : index
    %2 = vector.load %arg2[%c0_3, %c0_4] : memref<8x1xi32, #tpu.memory_space<vmem>>, vector<8x1xi32>
    %3 = tpu.iota {dimensions = array<i32: 1>} : vector<80x32xi32>
    %4 = vector.broadcast %1 : vector<80x1xi32> to vector<80x32xi32>
    %5 = arith.cmpi eq, %3, %4 : vector<80x32xi32>
    %6 = arith.extui %5 : vector<80x32xi1> to vector<80x32xi32>
    %7 = arith.sitofp %6 : vector<80x32xi32> to vector<80x32xf32>
    %cst = arith.constant dense<0.000000e+00> : vector<80x32xf32>
    %8 = tpu.matmul %7, %0, %cst {dimension_numbers = #tpu.dot_dimension_numbers<[1], [0], [0], [1], [0, 0, 1, 1], [], []>} : vector<80x32xf32>, vector<32x32xf32>, vector<80x32xf32> -> vector<80x32xf32>
    %9 = vector.extract_strided_slice %8 {offsets = [0, 0], sizes = [2, 32], strides = [1, 1]} : vector<80x32xf32> to vector<2x32xf32>
    %10 = vector.extract_strided_slice %8 {offsets = [8, 0], sizes = [2, 32], strides = [1, 1]} : vector<80x32xf32> to vector<2x32xf32>
    %11 = vector.extract_strided_slice %8 {offsets = [16, 0], sizes = [64, 32], strides = [1, 1]} : vector<80x32xf32> to vector<64x32xf32>
    %c0_5 = arith.constant 0 : index
    %c0_6 = arith.constant 0 : index
    %12 = vector.load %arg3[%c0_5, %c0_6] : memref<32x128xbf16, #tpu.memory_space<vmem>>, vector<32x128xbf16>
    %c0_7 = arith.constant 0 : index
    %c0_8 = arith.constant 0 : index
    %13 = vector.load %arg4[%c0_7, %c0_8] : memref<32x128xbf16, #tpu.memory_space<vmem>>, vector<32x128xbf16>
    %c0_9 = arith.constant 0 : index
    %c0_10 = arith.constant 0 : index
    %14 = vector.load %arg5[%c0_9, %c0_10] : memref<1x128xf32, #tpu.memory_space<vmem>>, vector<1x128xf32>
    %15 = arith.truncf %11 : vector<64x32xf32> to vector<64x32xbf16>
    %cst_11 = arith.constant dense<0.000000e+00> : vector<64x128xf32>
    %16 = tpu.matmul %15, %12, %cst_11 {dimension_numbers = #tpu.dot_dimension_numbers<[1], [0], [0], [1], [0, 0, 1, 1], [], []>} : vector<64x32xbf16>, vector<32x128xbf16>, vector<64x128xf32> -> vector<64x128xf32>
    %17 = vector.broadcast %14 : vector<1x128xf32> to vector<64x128xf32>
    %18 = arith.addf %16, %17 : vector<64x128xf32>
    %19 = tpu.iota {dimensions = array<i32: 1>} : vector<8x8xi32>
    %20 = vector.broadcast %2 : vector<8x1xi32> to vector<8x8xi32>
    %21 = arith.cmpi sge, %19, %20 : vector<8x8xi32>
    %cst_12 = arith.constant 1.000000e+00 : f32
    %cst_13 = arith.constant 0.000000e+00 : f32
    %22 = vector.broadcast %cst_12 : f32 to vector<8x8xf32>
    %23 = vector.broadcast %cst_13 : f32 to vector<8x8xf32>
    %24 = arith.select %21, %22, %23 : vector<8x8xi1>, vector<8x8xf32>
    %c0_14 = arith.constant 0 : index
    %c0_15 = arith.constant 0 : index
    %25 = vector.load %arg6[%c0_14, %c0_15] : memref<1x32xf32, #tpu.memory_space<vmem>>, vector<1x32xf32>
    %c0_16 = arith.constant 0 : index
    %c0_17 = arith.constant 0 : index
    %26 = vector.load %arg7[%c0_16, %c0_17] : memref<1x1xf32, #tpu.memory_space<vmem>>, vector<1x1xf32>
    %cst_18 = arith.constant 0.000000e+00 : f32
    %27 = vector.broadcast %cst_18 : f32 to vector<8x32xf32>
    %cst_19 = arith.constant 0.000000e+00 : f32
    %28 = vector.broadcast %cst_19 : f32 to vector<8x32xf32>
    %29 = vector.extract_strided_slice %18 {offsets = [0, 0], sizes = [8, 128], strides = [1, 1]} : vector<64x128xf32> to vector<8x128xf32>
    %30 = arith.truncf %27 : vector<8x32xf32> to vector<8x32xbf16>
    %cst_20 = arith.constant dense<0.000000e+00> : vector<8x128xf32>
    %31 = tpu.matmul %30, %13, %cst_20 {dimension_numbers = #tpu.dot_dimension_numbers<[1], [0], [0], [1], [0, 0, 1, 1], [], []>} : vector<8x32xbf16>, vector<32x128xbf16>, vector<8x128xf32> -> vector<8x128xf32>
    %32 = arith.addf %29, %31 : vector<8x128xf32>
    %33 = vector.extract_strided_slice %32 {offsets = [0, 0], sizes = [8, 96], strides = [1, 1]} : vector<8x128xf32> to vector<8x96xf32>
    %34 = arith.negf %33 : vector<8x96xf32>
    %35 = math.exp %34 : vector<8x96xf32>
    %cst_21 = arith.constant 1.000000e+00 : f32
    %36 = vector.broadcast %cst_21 : f32 to vector<8x96xf32>
    %37 = arith.addf %36, %35 : vector<8x96xf32>
    %38 = arith.divf %36, %37 : vector<8x96xf32>
    %39 = vector.extract_strided_slice %32 {offsets = [0, 96], sizes = [8, 32], strides = [1, 1]} : vector<8x128xf32> to vector<8x32xf32>
    %40 = math.tanh %39 : vector<8x32xf32>
    %41 = vector.extract_strided_slice %38 {offsets = [0, 0], sizes = [8, 32], strides = [1, 1]} : vector<8x96xf32> to vector<8x32xf32>
    %42 = vector.extract_strided_slice %38 {offsets = [0, 32], sizes = [8, 32], strides = [1, 1]} : vector<8x96xf32> to vector<8x32xf32>
    %43 = vector.extract_strided_slice %38 {offsets = [0, 64], sizes = [8, 32], strides = [1, 1]} : vector<8x96xf32> to vector<8x32xf32>
    %44 = arith.mulf %42, %28 : vector<8x32xf32>
    %45 = arith.mulf %41, %40 : vector<8x32xf32>
    %46 = arith.addf %44, %45 : vector<8x32xf32>
    %47 = math.tanh %46 : vector<8x32xf32>
    %48 = arith.mulf %43, %47 : vector<8x32xf32>
    %49 = vector.broadcast %25 : vector<1x32xf32> to vector<8x32xf32>
    %50 = arith.mulf %48, %49 : vector<8x32xf32>
    %cst_22 = arith.constant dense<0.000000e+00> : vector<8xf32>
    %51 = vector.multi_reduction <add>, %50, %cst_22 [1] : vector<8x32xf32> to vector<8xf32>
    %52 = vector.shape_cast %51 : vector<8xf32> to vector<8x1xf32>
    %53 = vector.broadcast %26 : vector<1x1xf32> to vector<8x1xf32>
    %54 = arith.addf %52, %53 : vector<8x1xf32>
    %55 = vector.extract_strided_slice %24 {offsets = [0, 0], sizes = [8, 1], strides = [1, 1]} : vector<8x8xf32> to vector<8x1xf32>
    %cst_23 = arith.constant 1.000000e+00 : f32
    %56 = vector.broadcast %cst_23 : f32 to vector<8x1xf32>
    %57 = arith.subf %56, %55 : vector<8x1xf32>
    %58 = arith.mulf %57, %54 : vector<8x1xf32>
    %cst_24 = arith.constant 9.99999971E-10 : f32
    %59 = vector.broadcast %cst_24 : f32 to vector<8x1xf32>
    %60 = arith.mulf %55, %59 : vector<8x1xf32>
    %61 = arith.addf %58, %60 : vector<8x1xf32>
    %cst_25 = arith.constant 1.000000e+00 : f32
    %62 = vector.broadcast %cst_25 : f32 to vector<8x1xf32>
    %63 = vector.extract_strided_slice %18 {offsets = [8, 0], sizes = [8, 128], strides = [1, 1]} : vector<64x128xf32> to vector<8x128xf32>
    %64 = arith.truncf %48 : vector<8x32xf32> to vector<8x32xbf16>
    %cst_26 = arith.constant dense<0.000000e+00> : vector<8x128xf32>
    %65 = tpu.matmul %64, %13, %cst_26 {dimension_numbers = #tpu.dot_dimension_numbers<[1], [0], [0], [1], [0, 0, 1, 1], [], []>} : vector<8x32xbf16>, vector<32x128xbf16>, vector<8x128xf32> -> vector<8x128xf32>
    %66 = arith.addf %63, %65 : vector<8x128xf32>
    %67 = vector.extract_strided_slice %66 {offsets = [0, 0], sizes = [8, 96], strides = [1, 1]} : vector<8x128xf32> to vector<8x96xf32>
    %68 = arith.negf %67 : vector<8x96xf32>
    %69 = math.exp %68 : vector<8x96xf32>
    %cst_27 = arith.constant 1.000000e+00 : f32
    %70 = vector.broadcast %cst_27 : f32 to vector<8x96xf32>
    %71 = arith.addf %70, %69 : vector<8x96xf32>
    %72 = arith.divf %70, %71 : vector<8x96xf32>
    %73 = vector.extract_strided_slice %66 {offsets = [0, 96], sizes = [8, 32], strides = [1, 1]} : vector<8x128xf32> to vector<8x32xf32>
    %74 = math.tanh %73 : vector<8x32xf32>
    %75 = vector.extract_strided_slice %72 {offsets = [0, 0], sizes = [8, 32], strides = [1, 1]} : vector<8x96xf32> to vector<8x32xf32>
    %76 = vector.extract_strided_slice %72 {offsets = [0, 32], sizes = [8, 32], strides = [1, 1]} : vector<8x96xf32> to vector<8x32xf32>
    %77 = vector.extract_strided_slice %72 {offsets = [0, 64], sizes = [8, 32], strides = [1, 1]} : vector<8x96xf32> to vector<8x32xf32>
    %78 = arith.mulf %76, %46 : vector<8x32xf32>
    %79 = arith.mulf %75, %74 : vector<8x32xf32>
    %80 = arith.addf %78, %79 : vector<8x32xf32>
    %81 = math.tanh %80 : vector<8x32xf32>
    %82 = arith.mulf %77, %81 : vector<8x32xf32>
    %83 = vector.broadcast %25 : vector<1x32xf32> to vector<8x32xf32>
    %84 = arith.mulf %82, %83 : vector<8x32xf32>
    %cst_28 = arith.constant dense<0.000000e+00> : vector<8xf32>
    %85 = vector.multi_reduction <add>, %84, %cst_28 [1] : vector<8x32xf32> to vector<8xf32>
    %86 = vector.shape_cast %85 : vector<8xf32> to vector<8x1xf32>
    %87 = vector.broadcast %26 : vector<1x1xf32> to vector<8x1xf32>
    %88 = arith.addf %86, %87 : vector<8x1xf32>
    %89 = vector.extract_strided_slice %24 {offsets = [0, 1], sizes = [8, 1], strides = [1, 1]} : vector<8x8xf32> to vector<8x1xf32>
    %cst_29 = arith.constant 1.000000e+00 : f32
    %90 = vector.broadcast %cst_29 : f32 to vector<8x1xf32>
    %91 = arith.subf %90, %89 : vector<8x1xf32>
    %92 = arith.mulf %91, %88 : vector<8x1xf32>
    %cst_30 = arith.constant 9.99999971E-10 : f32
    %93 = vector.broadcast %cst_30 : f32 to vector<8x1xf32>
    %94 = arith.mulf %89, %93 : vector<8x1xf32>
    %95 = arith.addf %92, %94 : vector<8x1xf32>
    %96 = arith.maximumf %61, %95 : vector<8x1xf32>
    %97 = arith.subf %61, %96 : vector<8x1xf32>
    %98 = math.exp %97 : vector<8x1xf32>
    %99 = arith.subf %95, %96 : vector<8x1xf32>
    %100 = math.exp %99 : vector<8x1xf32>
    %101 = arith.mulf %98, %62 : vector<8x1xf32>
    %102 = arith.addf %101, %100 : vector<8x1xf32>
    %103 = vector.broadcast %98 : vector<8x1xf32> to vector<8x32xf32>
    %104 = arith.mulf %103, %48 : vector<8x32xf32>
    %105 = vector.broadcast %100 : vector<8x1xf32> to vector<8x32xf32>
    %106 = arith.mulf %105, %82 : vector<8x32xf32>
    %107 = arith.addf %104, %106 : vector<8x32xf32>
    %108 = vector.extract_strided_slice %18 {offsets = [16, 0], sizes = [8, 128], strides = [1, 1]} : vector<64x128xf32> to vector<8x128xf32>
    %109 = arith.truncf %82 : vector<8x32xf32> to vector<8x32xbf16>
    %cst_31 = arith.constant dense<0.000000e+00> : vector<8x128xf32>
    %110 = tpu.matmul %109, %13, %cst_31 {dimension_numbers = #tpu.dot_dimension_numbers<[1], [0], [0], [1], [0, 0, 1, 1], [], []>} : vector<8x32xbf16>, vector<32x128xbf16>, vector<8x128xf32> -> vector<8x128xf32>
    %111 = arith.addf %108, %110 : vector<8x128xf32>
    %112 = vector.extract_strided_slice %111 {offsets = [0, 0], sizes = [8, 96], strides = [1, 1]} : vector<8x128xf32> to vector<8x96xf32>
    %113 = arith.negf %112 : vector<8x96xf32>
    %114 = math.exp %113 : vector<8x96xf32>
    %cst_32 = arith.constant 1.000000e+00 : f32
    %115 = vector.broadcast %cst_32 : f32 to vector<8x96xf32>
    %116 = arith.addf %115, %114 : vector<8x96xf32>
    %117 = arith.divf %115, %116 : vector<8x96xf32>
    %118 = vector.extract_strided_slice %111 {offsets = [0, 96], sizes = [8, 32], strides = [1, 1]} : vector<8x128xf32> to vector<8x32xf32>
    %119 = math.tanh %118 : vector<8x32xf32>
    %120 = vector.extract_strided_slice %117 {offsets = [0, 0], sizes = [8, 32], strides = [1, 1]} : vector<8x96xf32> to vector<8x32xf32>
    %121 = vector.extract_strided_slice %117 {offsets = [0, 32], sizes = [8, 32], strides = [1, 1]} : vector<8x96xf32> to vector<8x32xf32>
    %122 = vector.extract_strided_slice %117 {offsets = [0, 64], sizes = [8, 32], strides = [1, 1]} : vector<8x96xf32> to vector<8x32xf32>
    %123 = arith.mulf %121, %80 : vector<8x32xf32>
    %124 = arith.mulf %120, %119 : vector<8x32xf32>
    %125 = arith.addf %123, %124 : vector<8x32xf32>
    %126 = math.tanh %125 : vector<8x32xf32>
    %127 = arith.mulf %122, %126 : vector<8x32xf32>
    %128 = vector.broadcast %25 : vector<1x32xf32> to vector<8x32xf32>
    %129 = arith.mulf %127, %128 : vector<8x32xf32>
    %cst_33 = arith.constant dense<0.000000e+00> : vector<8xf32>
    %130 = vector.multi_reduction <add>, %129, %cst_33 [1] : vector<8x32xf32> to vector<8xf32>
    %131 = vector.shape_cast %130 : vector<8xf32> to vector<8x1xf32>
    %132 = vector.broadcast %26 : vector<1x1xf32> to vector<8x1xf32>
    %133 = arith.addf %131, %132 : vector<8x1xf32>
    %134 = vector.extract_strided_slice %24 {offsets = [0, 2], sizes = [8, 1], strides = [1, 1]} : vector<8x8xf32> to vector<8x1xf32>
    %cst_34 = arith.constant 1.000000e+00 : f32
    %135 = vector.broadcast %cst_34 : f32 to vector<8x1xf32>
    %136 = arith.subf %135, %134 : vector<8x1xf32>
    %137 = arith.mulf %136, %133 : vector<8x1xf32>
    %cst_35 = arith.constant 9.99999971E-10 : f32
    %138 = vector.broadcast %cst_35 : f32 to vector<8x1xf32>
    %139 = arith.mulf %134, %138 : vector<8x1xf32>
    %140 = arith.addf %137, %139 : vector<8x1xf32>
    %141 = arith.maximumf %96, %140 : vector<8x1xf32>
    %142 = arith.subf %96, %141 : vector<8x1xf32>
    %143 = math.exp %142 : vector<8x1xf32>
    %144 = arith.subf %140, %141 : vector<8x1xf32>
    %145 = math.exp %144 : vector<8x1xf32>
    %146 = arith.mulf %143, %102 : vector<8x1xf32>
    %147 = arith.addf %146, %145 : vector<8x1xf32>
    %148 = vector.broadcast %143 : vector<8x1xf32> to vector<8x32xf32>
    %149 = arith.mulf %148, %107 : vector<8x32xf32>
    %150 = vector.broadcast %145 : vector<8x1xf32> to vector<8x32xf32>
    %151 = arith.mulf %150, %127 : vector<8x32xf32>
    %152 = arith.addf %149, %151 : vector<8x32xf32>
    %153 = vector.extract_strided_slice %18 {offsets = [24, 0], sizes = [8, 128], strides = [1, 1]} : vector<64x128xf32> to vector<8x128xf32>
    %154 = arith.truncf %127 : vector<8x32xf32> to vector<8x32xbf16>
    %cst_36 = arith.constant dense<0.000000e+00> : vector<8x128xf32>
    %155 = tpu.matmul %154, %13, %cst_36 {dimension_numbers = #tpu.dot_dimension_numbers<[1], [0], [0], [1], [0, 0, 1, 1], [], []>} : vector<8x32xbf16>, vector<32x128xbf16>, vector<8x128xf32> -> vector<8x128xf32>
    %156 = arith.addf %153, %155 : vector<8x128xf32>
    %157 = vector.extract_strided_slice %156 {offsets = [0, 0], sizes = [8, 96], strides = [1, 1]} : vector<8x128xf32> to vector<8x96xf32>
    %158 = arith.negf %157 : vector<8x96xf32>
    %159 = math.exp %158 : vector<8x96xf32>
    %cst_37 = arith.constant 1.000000e+00 : f32
    %160 = vector.broadcast %cst_37 : f32 to vector<8x96xf32>
    %161 = arith.addf %160, %159 : vector<8x96xf32>
    %162 = arith.divf %160, %161 : vector<8x96xf32>
    %163 = vector.extract_strided_slice %156 {offsets = [0, 96], sizes = [8, 32], strides = [1, 1]} : vector<8x128xf32> to vector<8x32xf32>
    %164 = math.tanh %163 : vector<8x32xf32>
    %165 = vector.extract_strided_slice %162 {offsets = [0, 0], sizes = [8, 32], strides = [1, 1]} : vector<8x96xf32> to vector<8x32xf32>
    %166 = vector.extract_strided_slice %162 {offsets = [0, 32], sizes = [8, 32], strides = [1, 1]} : vector<8x96xf32> to vector<8x32xf32>
    %167 = vector.extract_strided_slice %162 {offsets = [0, 64], sizes = [8, 32], strides = [1, 1]} : vector<8x96xf32> to vector<8x32xf32>
    %168 = arith.mulf %166, %125 : vector<8x32xf32>
    %169 = arith.mulf %165, %164 : vector<8x32xf32>
    %170 = arith.addf %168, %169 : vector<8x32xf32>
    %171 = math.tanh %170 : vector<8x32xf32>
    %172 = arith.mulf %167, %171 : vector<8x32xf32>
    %173 = vector.broadcast %25 : vector<1x32xf32> to vector<8x32xf32>
    %174 = arith.mulf %172, %173 : vector<8x32xf32>
    %cst_38 = arith.constant dense<0.000000e+00> : vector<8xf32>
    %175 = vector.multi_reduction <add>, %174, %cst_38 [1] : vector<8x32xf32> to vector<8xf32>
    %176 = vector.shape_cast %175 : vector<8xf32> to vector<8x1xf32>
    %177 = vector.broadcast %26 : vector<1x1xf32> to vector<8x1xf32>
    %178 = arith.addf %176, %177 : vector<8x1xf32>
    %179 = vector.extract_strided_slice %24 {offsets = [0, 3], sizes = [8, 1], strides = [1, 1]} : vector<8x8xf32> to vector<8x1xf32>
    %cst_39 = arith.constant 1.000000e+00 : f32
    %180 = vector.broadcast %cst_39 : f32 to vector<8x1xf32>
    %181 = arith.subf %180, %179 : vector<8x1xf32>
    %182 = arith.mulf %181, %178 : vector<8x1xf32>
    %cst_40 = arith.constant 9.99999971E-10 : f32
    %183 = vector.broadcast %cst_40 : f32 to vector<8x1xf32>
    %184 = arith.mulf %179, %183 : vector<8x1xf32>
    %185 = arith.addf %182, %184 : vector<8x1xf32>
    %186 = arith.maximumf %141, %185 : vector<8x1xf32>
    %187 = arith.subf %141, %186 : vector<8x1xf32>
    %188 = math.exp %187 : vector<8x1xf32>
    %189 = arith.subf %185, %186 : vector<8x1xf32>
    %190 = math.exp %189 : vector<8x1xf32>
    %191 = arith.mulf %188, %147 : vector<8x1xf32>
    %192 = arith.addf %191, %190 : vector<8x1xf32>
    %193 = vector.broadcast %188 : vector<8x1xf32> to vector<8x32xf32>
    %194 = arith.mulf %193, %152 : vector<8x32xf32>
    %195 = vector.broadcast %190 : vector<8x1xf32> to vector<8x32xf32>
    %196 = arith.mulf %195, %172 : vector<8x32xf32>
    %197 = arith.addf %194, %196 : vector<8x32xf32>
    %198 = vector.extract_strided_slice %18 {offsets = [32, 0], sizes = [8, 128], strides = [1, 1]} : vector<64x128xf32> to vector<8x128xf32>
    %199 = arith.truncf %172 : vector<8x32xf32> to vector<8x32xbf16>
    %cst_41 = arith.constant dense<0.000000e+00> : vector<8x128xf32>
    %200 = tpu.matmul %199, %13, %cst_41 {dimension_numbers = #tpu.dot_dimension_numbers<[1], [0], [0], [1], [0, 0, 1, 1], [], []>} : vector<8x32xbf16>, vector<32x128xbf16>, vector<8x128xf32> -> vector<8x128xf32>
    %201 = arith.addf %198, %200 : vector<8x128xf32>
    %202 = vector.extract_strided_slice %201 {offsets = [0, 0], sizes = [8, 96], strides = [1, 1]} : vector<8x128xf32> to vector<8x96xf32>
    %203 = arith.negf %202 : vector<8x96xf32>
    %204 = math.exp %203 : vector<8x96xf32>
    %cst_42 = arith.constant 1.000000e+00 : f32
    %205 = vector.broadcast %cst_42 : f32 to vector<8x96xf32>
    %206 = arith.addf %205, %204 : vector<8x96xf32>
    %207 = arith.divf %205, %206 : vector<8x96xf32>
    %208 = vector.extract_strided_slice %201 {offsets = [0, 96], sizes = [8, 32], strides = [1, 1]} : vector<8x128xf32> to vector<8x32xf32>
    %209 = math.tanh %208 : vector<8x32xf32>
    %210 = vector.extract_strided_slice %207 {offsets = [0, 0], sizes = [8, 32], strides = [1, 1]} : vector<8x96xf32> to vector<8x32xf32>
    %211 = vector.extract_strided_slice %207 {offsets = [0, 32], sizes = [8, 32], strides = [1, 1]} : vector<8x96xf32> to vector<8x32xf32>
    %212 = vector.extract_strided_slice %207 {offsets = [0, 64], sizes = [8, 32], strides = [1, 1]} : vector<8x96xf32> to vector<8x32xf32>
    %213 = arith.mulf %211, %170 : vector<8x32xf32>
    %214 = arith.mulf %210, %209 : vector<8x32xf32>
    %215 = arith.addf %213, %214 : vector<8x32xf32>
    %216 = math.tanh %215 : vector<8x32xf32>
    %217 = arith.mulf %212, %216 : vector<8x32xf32>
    %218 = vector.broadcast %25 : vector<1x32xf32> to vector<8x32xf32>
    %219 = arith.mulf %217, %218 : vector<8x32xf32>
    %cst_43 = arith.constant dense<0.000000e+00> : vector<8xf32>
    %220 = vector.multi_reduction <add>, %219, %cst_43 [1] : vector<8x32xf32> to vector<8xf32>
    %221 = vector.shape_cast %220 : vector<8xf32> to vector<8x1xf32>
    %222 = vector.broadcast %26 : vector<1x1xf32> to vector<8x1xf32>
    %223 = arith.addf %221, %222 : vector<8x1xf32>
    %224 = vector.extract_strided_slice %24 {offsets = [0, 4], sizes = [8, 1], strides = [1, 1]} : vector<8x8xf32> to vector<8x1xf32>
    %cst_44 = arith.constant 1.000000e+00 : f32
    %225 = vector.broadcast %cst_44 : f32 to vector<8x1xf32>
    %226 = arith.subf %225, %224 : vector<8x1xf32>
    %227 = arith.mulf %226, %223 : vector<8x1xf32>
    %cst_45 = arith.constant 9.99999971E-10 : f32
    %228 = vector.broadcast %cst_45 : f32 to vector<8x1xf32>
    %229 = arith.mulf %224, %228 : vector<8x1xf32>
    %230 = arith.addf %227, %229 : vector<8x1xf32>
    %231 = arith.maximumf %186, %230 : vector<8x1xf32>
    %232 = arith.subf %186, %231 : vector<8x1xf32>
    %233 = math.exp %232 : vector<8x1xf32>
    %234 = arith.subf %230, %231 : vector<8x1xf32>
    %235 = math.exp %234 : vector<8x1xf32>
    %236 = arith.mulf %233, %192 : vector<8x1xf32>
    %237 = arith.addf %236, %235 : vector<8x1xf32>
    %238 = vector.broadcast %233 : vector<8x1xf32> to vector<8x32xf32>
    %239 = arith.mulf %238, %197 : vector<8x32xf32>
    %240 = vector.broadcast %235 : vector<8x1xf32> to vector<8x32xf32>
    %241 = arith.mulf %240, %217 : vector<8x32xf32>
    %242 = arith.addf %239, %241 : vector<8x32xf32>
    %243 = vector.extract_strided_slice %18 {offsets = [40, 0], sizes = [8, 128], strides = [1, 1]} : vector<64x128xf32> to vector<8x128xf32>
    %244 = arith.truncf %217 : vector<8x32xf32> to vector<8x32xbf16>
    %cst_46 = arith.constant dense<0.000000e+00> : vector<8x128xf32>
    %245 = tpu.matmul %244, %13, %cst_46 {dimension_numbers = #tpu.dot_dimension_numbers<[1], [0], [0], [1], [0, 0, 1, 1], [], []>} : vector<8x32xbf16>, vector<32x128xbf16>, vector<8x128xf32> -> vector<8x128xf32>
    %246 = arith.addf %243, %245 : vector<8x128xf32>
    %247 = vector.extract_strided_slice %246 {offsets = [0, 0], sizes = [8, 96], strides = [1, 1]} : vector<8x128xf32> to vector<8x96xf32>
    %248 = arith.negf %247 : vector<8x96xf32>
    %249 = math.exp %248 : vector<8x96xf32>
    %cst_47 = arith.constant 1.000000e+00 : f32
    %250 = vector.broadcast %cst_47 : f32 to vector<8x96xf32>
    %251 = arith.addf %250, %249 : vector<8x96xf32>
    %252 = arith.divf %250, %251 : vector<8x96xf32>
    %253 = vector.extract_strided_slice %246 {offsets = [0, 96], sizes = [8, 32], strides = [1, 1]} : vector<8x128xf32> to vector<8x32xf32>
    %254 = math.tanh %253 : vector<8x32xf32>
    %255 = vector.extract_strided_slice %252 {offsets = [0, 0], sizes = [8, 32], strides = [1, 1]} : vector<8x96xf32> to vector<8x32xf32>
    %256 = vector.extract_strided_slice %252 {offsets = [0, 32], sizes = [8, 32], strides = [1, 1]} : vector<8x96xf32> to vector<8x32xf32>
    %257 = vector.extract_strided_slice %252 {offsets = [0, 64], sizes = [8, 32], strides = [1, 1]} : vector<8x96xf32> to vector<8x32xf32>
    %258 = arith.mulf %256, %215 : vector<8x32xf32>
    %259 = arith.mulf %255, %254 : vector<8x32xf32>
    %260 = arith.addf %258, %259 : vector<8x32xf32>
    %261 = math.tanh %260 : vector<8x32xf32>
    %262 = arith.mulf %257, %261 : vector<8x32xf32>
    %263 = vector.broadcast %25 : vector<1x32xf32> to vector<8x32xf32>
    %264 = arith.mulf %262, %263 : vector<8x32xf32>
    %cst_48 = arith.constant dense<0.000000e+00> : vector<8xf32>
    %265 = vector.multi_reduction <add>, %264, %cst_48 [1] : vector<8x32xf32> to vector<8xf32>
    %266 = vector.shape_cast %265 : vector<8xf32> to vector<8x1xf32>
    %267 = vector.broadcast %26 : vector<1x1xf32> to vector<8x1xf32>
    %268 = arith.addf %266, %267 : vector<8x1xf32>
    %269 = vector.extract_strided_slice %24 {offsets = [0, 5], sizes = [8, 1], strides = [1, 1]} : vector<8x8xf32> to vector<8x1xf32>
    %cst_49 = arith.constant 1.000000e+00 : f32
    %270 = vector.broadcast %cst_49 : f32 to vector<8x1xf32>
    %271 = arith.subf %270, %269 : vector<8x1xf32>
    %272 = arith.mulf %271, %268 : vector<8x1xf32>
    %cst_50 = arith.constant 9.99999971E-10 : f32
    %273 = vector.broadcast %cst_50 : f32 to vector<8x1xf32>
    %274 = arith.mulf %269, %273 : vector<8x1xf32>
    %275 = arith.addf %272, %274 : vector<8x1xf32>
    %276 = arith.maximumf %231, %275 : vector<8x1xf32>
    %277 = arith.subf %231, %276 : vector<8x1xf32>
    %278 = math.exp %277 : vector<8x1xf32>
    %279 = arith.subf %275, %276 : vector<8x1xf32>
    %280 = math.exp %279 : vector<8x1xf32>
    %281 = arith.mulf %278, %237 : vector<8x1xf32>
    %282 = arith.addf %281, %280 : vector<8x1xf32>
    %283 = vector.broadcast %278 : vector<8x1xf32> to vector<8x32xf32>
    %284 = arith.mulf %283, %242 : vector<8x32xf32>
    %285 = vector.broadcast %280 : vector<8x1xf32> to vector<8x32xf32>
    %286 = arith.mulf %285, %262 : vector<8x32xf32>
    %287 = arith.addf %284, %286 : vector<8x32xf32>
    %288 = vector.extract_strided_slice %18 {offsets = [48, 0], sizes = [8, 128], strides = [1, 1]} : vector<64x128xf32> to vector<8x128xf32>
    %289 = arith.truncf %262 : vector<8x32xf32> to vector<8x32xbf16>
    %cst_51 = arith.constant dense<0.000000e+00> : vector<8x128xf32>
    %290 = tpu.matmul %289, %13, %cst_51 {dimension_numbers = #tpu.dot_dimension_numbers<[1], [0], [0], [1], [0, 0, 1, 1], [], []>} : vector<8x32xbf16>, vector<32x128xbf16>, vector<8x128xf32> -> vector<8x128xf32>
    %291 = arith.addf %288, %290 : vector<8x128xf32>
    %292 = vector.extract_strided_slice %291 {offsets = [0, 0], sizes = [8, 96], strides = [1, 1]} : vector<8x128xf32> to vector<8x96xf32>
    %293 = arith.negf %292 : vector<8x96xf32>
    %294 = math.exp %293 : vector<8x96xf32>
    %cst_52 = arith.constant 1.000000e+00 : f32
    %295 = vector.broadcast %cst_52 : f32 to vector<8x96xf32>
    %296 = arith.addf %295, %294 : vector<8x96xf32>
    %297 = arith.divf %295, %296 : vector<8x96xf32>
    %298 = vector.extract_strided_slice %291 {offsets = [0, 96], sizes = [8, 32], strides = [1, 1]} : vector<8x128xf32> to vector<8x32xf32>
    %299 = math.tanh %298 : vector<8x32xf32>
    %300 = vector.extract_strided_slice %297 {offsets = [0, 0], sizes = [8, 32], strides = [1, 1]} : vector<8x96xf32> to vector<8x32xf32>
    %301 = vector.extract_strided_slice %297 {offsets = [0, 32], sizes = [8, 32], strides = [1, 1]} : vector<8x96xf32> to vector<8x32xf32>
    %302 = vector.extract_strided_slice %297 {offsets = [0, 64], sizes = [8, 32], strides = [1, 1]} : vector<8x96xf32> to vector<8x32xf32>
    %303 = arith.mulf %301, %260 : vector<8x32xf32>
    %304 = arith.mulf %300, %299 : vector<8x32xf32>
    %305 = arith.addf %303, %304 : vector<8x32xf32>
    %306 = math.tanh %305 : vector<8x32xf32>
    %307 = arith.mulf %302, %306 : vector<8x32xf32>
    %308 = vector.broadcast %25 : vector<1x32xf32> to vector<8x32xf32>
    %309 = arith.mulf %307, %308 : vector<8x32xf32>
    %cst_53 = arith.constant dense<0.000000e+00> : vector<8xf32>
    %310 = vector.multi_reduction <add>, %309, %cst_53 [1] : vector<8x32xf32> to vector<8xf32>
    %311 = vector.shape_cast %310 : vector<8xf32> to vector<8x1xf32>
    %312 = vector.broadcast %26 : vector<1x1xf32> to vector<8x1xf32>
    %313 = arith.addf %311, %312 : vector<8x1xf32>
    %314 = vector.extract_strided_slice %24 {offsets = [0, 6], sizes = [8, 1], strides = [1, 1]} : vector<8x8xf32> to vector<8x1xf32>
    %cst_54 = arith.constant 1.000000e+00 : f32
    %315 = vector.broadcast %cst_54 : f32 to vector<8x1xf32>
    %316 = arith.subf %315, %314 : vector<8x1xf32>
    %317 = arith.mulf %316, %313 : vector<8x1xf32>
    %cst_55 = arith.constant 9.99999971E-10 : f32
    %318 = vector.broadcast %cst_55 : f32 to vector<8x1xf32>
    %319 = arith.mulf %314, %318 : vector<8x1xf32>
    %320 = arith.addf %317, %319 : vector<8x1xf32>
    %321 = arith.maximumf %276, %320 : vector<8x1xf32>
    %322 = arith.subf %276, %321 : vector<8x1xf32>
    %323 = math.exp %322 : vector<8x1xf32>
    %324 = arith.subf %320, %321 : vector<8x1xf32>
    %325 = math.exp %324 : vector<8x1xf32>
    %326 = arith.mulf %323, %282 : vector<8x1xf32>
    %327 = arith.addf %326, %325 : vector<8x1xf32>
    %328 = vector.broadcast %323 : vector<8x1xf32> to vector<8x32xf32>
    %329 = arith.mulf %328, %287 : vector<8x32xf32>
    %330 = vector.broadcast %325 : vector<8x1xf32> to vector<8x32xf32>
    %331 = arith.mulf %330, %307 : vector<8x32xf32>
    %332 = arith.addf %329, %331 : vector<8x32xf32>
    %333 = vector.extract_strided_slice %18 {offsets = [56, 0], sizes = [8, 128], strides = [1, 1]} : vector<64x128xf32> to vector<8x128xf32>
    %334 = arith.truncf %307 : vector<8x32xf32> to vector<8x32xbf16>
    %cst_56 = arith.constant dense<0.000000e+00> : vector<8x128xf32>
    %335 = tpu.matmul %334, %13, %cst_56 {dimension_numbers = #tpu.dot_dimension_numbers<[1], [0], [0], [1], [0, 0, 1, 1], [], []>} : vector<8x32xbf16>, vector<32x128xbf16>, vector<8x128xf32> -> vector<8x128xf32>
    %336 = arith.addf %333, %335 : vector<8x128xf32>
    %337 = vector.extract_strided_slice %336 {offsets = [0, 0], sizes = [8, 96], strides = [1, 1]} : vector<8x128xf32> to vector<8x96xf32>
    %338 = arith.negf %337 : vector<8x96xf32>
    %339 = math.exp %338 : vector<8x96xf32>
    %cst_57 = arith.constant 1.000000e+00 : f32
    %340 = vector.broadcast %cst_57 : f32 to vector<8x96xf32>
    %341 = arith.addf %340, %339 : vector<8x96xf32>
    %342 = arith.divf %340, %341 : vector<8x96xf32>
    %343 = vector.extract_strided_slice %336 {offsets = [0, 96], sizes = [8, 32], strides = [1, 1]} : vector<8x128xf32> to vector<8x32xf32>
    %344 = math.tanh %343 : vector<8x32xf32>
    %345 = vector.extract_strided_slice %342 {offsets = [0, 0], sizes = [8, 32], strides = [1, 1]} : vector<8x96xf32> to vector<8x32xf32>
    %346 = vector.extract_strided_slice %342 {offsets = [0, 32], sizes = [8, 32], strides = [1, 1]} : vector<8x96xf32> to vector<8x32xf32>
    %347 = vector.extract_strided_slice %342 {offsets = [0, 64], sizes = [8, 32], strides = [1, 1]} : vector<8x96xf32> to vector<8x32xf32>
    %348 = arith.mulf %346, %305 : vector<8x32xf32>
    %349 = arith.mulf %345, %344 : vector<8x32xf32>
    %350 = arith.addf %348, %349 : vector<8x32xf32>
    %351 = math.tanh %350 : vector<8x32xf32>
    %352 = arith.mulf %347, %351 : vector<8x32xf32>
    %353 = vector.broadcast %25 : vector<1x32xf32> to vector<8x32xf32>
    %354 = arith.mulf %352, %353 : vector<8x32xf32>
    %cst_58 = arith.constant dense<0.000000e+00> : vector<8xf32>
    %355 = vector.multi_reduction <add>, %354, %cst_58 [1] : vector<8x32xf32> to vector<8xf32>
    %356 = vector.shape_cast %355 : vector<8xf32> to vector<8x1xf32>
    %357 = vector.broadcast %26 : vector<1x1xf32> to vector<8x1xf32>
    %358 = arith.addf %356, %357 : vector<8x1xf32>
    %359 = vector.extract_strided_slice %24 {offsets = [0, 7], sizes = [8, 1], strides = [1, 1]} : vector<8x8xf32> to vector<8x1xf32>
    %cst_59 = arith.constant 1.000000e+00 : f32
    %360 = vector.broadcast %cst_59 : f32 to vector<8x1xf32>
    %361 = arith.subf %360, %359 : vector<8x1xf32>
    %362 = arith.mulf %361, %358 : vector<8x1xf32>
    %cst_60 = arith.constant 9.99999971E-10 : f32
    %363 = vector.broadcast %cst_60 : f32 to vector<8x1xf32>
    %364 = arith.mulf %359, %363 : vector<8x1xf32>
    %365 = arith.addf %362, %364 : vector<8x1xf32>
    %366 = arith.maximumf %321, %365 : vector<8x1xf32>
    %367 = arith.subf %321, %366 : vector<8x1xf32>
    %368 = math.exp %367 : vector<8x1xf32>
    %369 = arith.subf %365, %366 : vector<8x1xf32>
    %370 = math.exp %369 : vector<8x1xf32>
    %371 = arith.mulf %368, %327 : vector<8x1xf32>
    %372 = arith.addf %371, %370 : vector<8x1xf32>
    %373 = vector.broadcast %368 : vector<8x1xf32> to vector<8x32xf32>
    %374 = arith.mulf %373, %332 : vector<8x32xf32>
    %375 = vector.broadcast %370 : vector<8x1xf32> to vector<8x32xf32>
    %376 = arith.mulf %375, %352 : vector<8x32xf32>
    %377 = arith.addf %374, %376 : vector<8x32xf32>
    %378 = vector.broadcast %372 : vector<8x1xf32> to vector<8x32xf32>
    %379 = arith.divf %377, %378 : vector<8x32xf32>
    %380 = vector.extract_strided_slice %379 {offsets = [0, 0], sizes = [2, 32], strides = [1, 1]} : vector<8x32xf32> to vector<2x32xf32>
    %381 = vector.extract_strided_slice %379 {offsets = [2, 0], sizes = [2, 32], strides = [1, 1]} : vector<8x32xf32> to vector<2x32xf32>
    %c0_61 = arith.constant 0 : index
    %c0_62 = arith.constant 0 : index
    %382 = vector.load %arg8[%c0_61, %c0_62] : memref<128x128xbf16, #tpu.memory_space<vmem>>, vector<128x128xbf16>
    %383 = arith.truncf %9 : vector<2x32xf32> to vector<2x32xbf16>
    %384 = vector.extract_strided_slice %382 {offsets = [0, 0], sizes = [32, 128], strides = [1, 1]} : vector<128x128xbf16> to vector<32x128xbf16>
    %cst_63 = arith.constant dense<0.000000e+00> : vector<2x128xf32>
    %385 = tpu.matmul %383, %384, %cst_63 {dimension_numbers = #tpu.dot_dimension_numbers<[1], [0], [0], [1], [0, 0, 1, 1], [], []>} : vector<2x32xbf16>, vector<32x128xbf16>, vector<2x128xf32> -> vector<2x128xf32>
    %386 = arith.truncf %10 : vector<2x32xf32> to vector<2x32xbf16>
    %387 = vector.extract_strided_slice %382 {offsets = [32, 0], sizes = [32, 128], strides = [1, 1]} : vector<128x128xbf16> to vector<32x128xbf16>
    %cst_64 = arith.constant dense<0.000000e+00> : vector<2x128xf32>
    %388 = tpu.matmul %386, %387, %cst_64 {dimension_numbers = #tpu.dot_dimension_numbers<[1], [0], [0], [1], [0, 0, 1, 1], [], []>} : vector<2x32xbf16>, vector<32x128xbf16>, vector<2x128xf32> -> vector<2x128xf32>
    %389 = arith.addf %385, %388 : vector<2x128xf32>
    %390 = arith.truncf %380 : vector<2x32xf32> to vector<2x32xbf16>
    %391 = vector.extract_strided_slice %382 {offsets = [64, 0], sizes = [32, 128], strides = [1, 1]} : vector<128x128xbf16> to vector<32x128xbf16>
    %cst_65 = arith.constant dense<0.000000e+00> : vector<2x128xf32>
    %392 = tpu.matmul %390, %391, %cst_65 {dimension_numbers = #tpu.dot_dimension_numbers<[1], [0], [0], [1], [0, 0, 1, 1], [], []>} : vector<2x32xbf16>, vector<32x128xbf16>, vector<2x128xf32> -> vector<2x128xf32>
    %393 = arith.addf %389, %392 : vector<2x128xf32>
    %394 = arith.truncf %381 : vector<2x32xf32> to vector<2x32xbf16>
    %395 = vector.extract_strided_slice %382 {offsets = [96, 0], sizes = [32, 128], strides = [1, 1]} : vector<128x128xbf16> to vector<32x128xbf16>
    %cst_66 = arith.constant dense<0.000000e+00> : vector<2x128xf32>
    %396 = tpu.matmul %394, %395, %cst_66 {dimension_numbers = #tpu.dot_dimension_numbers<[1], [0], [0], [1], [0, 0, 1, 1], [], []>} : vector<2x32xbf16>, vector<32x128xbf16>, vector<2x128xf32> -> vector<2x128xf32>
    %397 = arith.addf %393, %396 : vector<2x128xf32>
    %c0_67 = arith.constant 0 : index
    %c0_68 = arith.constant 0 : index
    %398 = vector.load %arg9[%c0_67, %c0_68] : memref<1x128xf32, #tpu.memory_space<vmem>>, vector<1x128xf32>
    %399 = vector.broadcast %398 : vector<1x128xf32> to vector<2x128xf32>
    %400 = arith.addf %397, %399 : vector<2x128xf32>
    %c0_69 = arith.constant 0 : index
    %c0_70 = arith.constant 0 : index
    %401 = vector.load %arg10[%c0_69, %c0_70] : memref<2x128xf32, #tpu.memory_space<vmem>>, vector<2x128xf32>
    tpu.vector_store %arg10[%c0_69, %c0_70], %400 {strides = array<i32>} : memref<2x128xf32, #tpu.memory_space<vmem>>, vector<2x128xf32>,
    return
  }
}

</mosaic_0001>

<llo_original>
// kernel: tpu_custom_call.1
$region0: #{tpu_custom_call.1}
  #allocation0 [shape = 'u32[]', space=smem, size = 0x4, offset = 0x4, fixed_abs, tag = 'smem constant byte address 0x4 - core index']
  #allocation1 [shape = 'u32[72,128]{1,0:T(1,128)}', space=vmem, size = 0x9000, scoped, tag = 'internal scratch']
  #allocation2 [shape = 'f32[1,1]{1,0:T(1,128)S(1)}', space=vmem, size = 0x200, scoped, tag = 'scoped memory for tpu_custom_call.1']
  %s0 = inlined_call_operand.hbm [shape: f32[32,32], index: 0, kind: input, shape index: {}]
  %s1 = inlined_call_operand.vmem [shape: s32[80,1], index: 1, kind: input, shape index: {}]
  %s2 = inlined_call_operand.vmem [shape: s32[8,1], index: 2, kind: input, shape index: {}]
  %s3 = inlined_call_operand.vmem [shape: bf16[32,128], index: 3, kind: input, shape index: {}]
  %s4 = inlined_call_operand.hbm [shape: bf16[32,128], index: 4, kind: input, shape index: {}]
  %s5 = inlined_call_operand.vmem [shape: f32[1,128], index: 5, kind: input, shape index: {}]
  %s6 = inlined_call_operand.vmem [shape: f32[1,32], index: 6, kind: input, shape index: {}]
  %s7 = inlined_call_operand.<no memory space> [shape: f32[1,1], index: 7, kind: input, shape index: {}]
  %s8 = inlined_call_operand.vmem [shape: bf16[128,128], index: 8, kind: input, shape index: {}]
  %s9 = inlined_call_operand.vmem [shape: f32[1,128], index: 9, kind: input, shape index: {}]
  %s10 = inlined_call_operand.hbm [shape: f32[2,128], index: 10, kind: output, shape index: {}]
  %s11 = sld [smem:[#allocation0]]
  $region58: #{tpu_custom_call.1} parent=0
    _
  %s13 = ssub.s32 1, %s11
  %s14 = scalar_select 0, %s13, %s11
  %v15 = vstv %s7
  %16 = vst [vmem:[#allocation2] sm:$0x1] %v15
  $region1: #{tpu_custom_call.1} parent=0
    #allocation3 [shape = 'u8[16384]{0}', space=vmem, size = 0x4000, scoped, tag = 'input window, operand 0, single buffered']
    #allocation4 [shape = 's32[1]{0}', space=sflag, size = 0x4, scoped, tag = 'scoped memory for tpu_custom_call.1']
    #allocation5 [shape = 's32[1]{0}', space=sflag, size = 0x4, scoped, tag = 'scoped memory for tpu_custom_call.1']
    #allocation6 [shape = 'u8[8192]{0}', space=vmem, size = 0x2000, scoped, tag = 'input window, operand 4, single buffered']
    #allocation7 [shape = 's32[1]{0}', space=sflag, size = 0x4, scoped, tag = 'scoped memory for tpu_custom_call.1']
    #allocation8 [shape = 'u8[1024]{0}', space=vmem, size = 0x400, scoped, tag = 'output window, operand 0, single buffered']
    %17 = vsyncpa [#allocation4], 0
    %18 = vsyncpa [#allocation7], 0
    %19 = vsyncpa [#allocation5], 0
    // Predicated region
    $region2: #{tpu_custom_call.1} parent=1 // pred_check
      _
    $region3: #{tpu_custom_call.1} parent=1 // pred_check_branch
      %21 = sbr.rel (0) target = $region5
    $region4: #{tpu_custom_call.1} parent=1 // pred_region
      %23 = vsyncadd [#allocation4], 0
      %s24 = sshll.u32 %s0, 4
      %s25 = int_to_ptr.hbm [resolvable:$true] %s24
      %s26 = sshll.u32 [#allocation3], 4
      %s27 = int_to_ptr.vmem [resolvable:$true] %s26
      %32 = dma.hbm_to_vmem [thread:$0]  %s25, 512, %s27, [#allocation4], 128, 128, 8
    $region5: #{tpu_custom_call.1} parent=1 // pred_fallthru
      _
    // Predicated region
    $region6: #{tpu_custom_call.1} parent=1 // pred_check
      _
    $region7: #{tpu_custom_call.1} parent=1 // pred_check_branch
      %34 = sbr.rel (0) target = $region9
    $region8: #{tpu_custom_call.1} parent=1 // pred_region
      _
    $region9: #{tpu_custom_call.1} parent=1 // pred_fallthru
      _
    // Predicated region
    $region10: #{tpu_custom_call.1} parent=1 // pred_check
      _
    $region11: #{tpu_custom_call.1} parent=1 // pred_check_branch
      %36 = sbr.rel (0) target = $region13
    $region12: #{tpu_custom_call.1} parent=1 // pred_region
      _
    $region13: #{tpu_custom_call.1} parent=1 // pred_fallthru
      _
    // Predicated region
    $region14: #{tpu_custom_call.1} parent=1 // pred_check
      _
    $region15: #{tpu_custom_call.1} parent=1 // pred_check_branch
      %38 = sbr.rel (0) target = $region17
    $region16: #{tpu_custom_call.1} parent=1 // pred_region
      _
    $region17: #{tpu_custom_call.1} parent=1 // pred_fallthru
      _
    // Predicated region
    $region18: #{tpu_custom_call.1} parent=1 // pred_check
      _
    $region19: #{tpu_custom_call.1} parent=1 // pred_check_branch
      %40 = sbr.rel (0) target = $region21
    $region20: #{tpu_custom_call.1} parent=1 // pred_region
      %42 = vsyncadd [#allocation7], 0
      %s43 = sshll.u32 %s4, 4
      %s44 = int_to_ptr.hbm [resolvable:$true] %s43
      %s45 = sshll.u32 [#allocation6], 4
      %s46 = int_to_ptr.vmem [resolvable:$true] %s45
      %51 = dma.hbm_to_vmem [thread:$0]  %s44, 256, %s46, [#allocation7], 64, 64, 4
    $region21: #{tpu_custom_call.1} parent=1 // pred_fallthru
      _
    // Predicated region
    $region22: #{tpu_custom_call.1} parent=1 // pred_check
      _
    $region23: #{tpu_custom_call.1} parent=1 // pred_check_branch
      %53 = sbr.rel (0) target = $region25
    $region24: #{tpu_custom_call.1} parent=1 // pred_region
      _
    $region25: #{tpu_custom_call.1} parent=1 // pred_fallthru
      _
    // Predicated region
    $region26: #{tpu_custom_call.1} parent=1 // pred_check
      _
    $region27: #{tpu_custom_call.1} parent=1 // pred_check_branch
      %55 = sbr.rel (0) target = $region29
    $region28: #{tpu_custom_call.1} parent=1 // pred_region
      _
    $region29: #{tpu_custom_call.1} parent=1 // pred_fallthru
      _
    // Predicated region
    $region30: #{tpu_custom_call.1} parent=1 // pred_check
      _
    $region31: #{tpu_custom_call.1} parent=1 // pred_check_branch
      %57 = sbr.rel (0) target = $region33
    $region32: #{tpu_custom_call.1} parent=1 // pred_region
      _
    $region33: #{tpu_custom_call.1} parent=1 // pred_fallthru
      _
    // Predicated region
    $region34: #{tpu_custom_call.1} parent=1 // pred_check
      _
    $region35: #{tpu_custom_call.1} parent=1 // pred_check_branch
      %59 = sbr.rel (0) target = $region37
    $region36: #{tpu_custom_call.1} parent=1 // pred_region
      _
    $region37: #{tpu_custom_call.1} parent=1 // pred_fallthru
      _
    // Predicated region
    $region38: #{tpu_custom_call.1} parent=1 // pred_check
      _
    $region39: #{tpu_custom_call.1} parent=1 // pred_check_branch
      %61 = sbr.rel (0) target = $region41
    $region40: #{tpu_custom_call.1} parent=1 // pred_region
      _
    $region41: #{tpu_custom_call.1} parent=1 // pred_fallthru
      _
    // Predicated region
    $region42: #{tpu_custom_call.1} parent=1 // pred_check
      _
    $region43: #{tpu_custom_call.1} parent=1 // pred_check_branch
      %63 = sbr.rel (0) target = $region45
    $region44: #{tpu_custom_call.1} parent=1 // pred_region
      %65 = dma.done [#allocation4], 512
    $region45: #{tpu_custom_call.1} parent=1 // pred_fallthru
      _
    // Predicated region
    $region46: #{tpu_custom_call.1} parent=1 // pred_check
      _
    $region47: #{tpu_custom_call.1} parent=1 // pred_check_branch
      %67 = sbr.rel (0) target = $region49
    $region48: #{tpu_custom_call.1} parent=1 // pred_region
      %69 = dma.done [#allocation7], 256
    $region49: #{tpu_custom_call.1} parent=1 // pred_fallthru
      _
    %v71 = vld [vmem:[#allocation3] sm:$0xff]
    %v72 = vld [vmem:[#allocation3 + $0x8] sm:$0xff]
    %v73 = vld [vmem:[#allocation3 + $0x10] sm:$0xff]
    %v74 = vld [vmem:[#allocation3 + $0x18] sm:$0xff]
    %v75 = vld [vmem:[%s1] sm:$0xff]
    %v76 = vld [vmem:[%s1 + $0x8] sm:$0xff]
    %v77 = vld [vmem:[%s1 + $0x10] sm:$0xff]
    %v78 = vld [vmem:[%s1 + $0x18] sm:$0xff]
    %v79 = vld [vmem:[%s1 + $0x20] sm:$0xff]
    %v80 = vld [vmem:[%s1 + $0x28] sm:$0xff]
    %v81 = vld [vmem:[%s1 + $0x30] sm:$0xff]
    %v82 = vld [vmem:[%s1 + $0x38] sm:$0xff]
    %v83 = vld [vmem:[%s1 + $0x40] sm:$0xff]
    %v84 = vld [vmem:[%s1 + $0x48] sm:$0xff]
    %v85 = vld [vmem:[%s2] sm:$0xff]
    %v86 = vlaneseq
    %v87 = vand.u32 %v86, 127
    %88 = vset.pattern.permute.xlu0 0
    %89 = vperm.xlu0 %88, %v75
    %v90 = vpop.permute.xlu0 %89
    %91 = vset.pattern.permute.xlu0 0
    %92 = vperm.xlu0 %91, %v76
    %v93 = vpop.permute.xlu0 %92
    %94 = vset.pattern.permute.xlu0 0
    %95 = vperm.xlu0 %94, %v77
    %v96 = vpop.permute.xlu0 %95
    %97 = vset.pattern.permute.xlu0 0
    %98 = vperm.xlu0 %97, %v78
    %v99 = vpop.permute.xlu0 %98
    %100 = vset.pattern.permute.xlu0 0
    %101 = vperm.xlu0 %100, %v79
    %v102 = vpop.permute.xlu0 %101
    %103 = vset.pattern.permute.xlu0 0
    %104 = vperm.xlu0 %103, %v80
    %v105 = vpop.permute.xlu0 %104
    %106 = vset.pattern.permute.xlu0 0
    %107 = vperm.xlu0 %106, %v81
    %v108 = vpop.permute.xlu0 %107
    %109 = vset.pattern.permute.xlu0 0
    %110 = vperm.xlu0 %109, %v82
    %v111 = vpop.permute.xlu0 %110
    %112 = vset.pattern.permute.xlu0 0
    %113 = vperm.xlu0 %112, %v83
    %v114 = vpop.permute.xlu0 %113
    %115 = vset.pattern.permute.xlu0 0
    %116 = vperm.xlu0 %115, %v84
    %v117 = vpop.permute.xlu0 %116
    %vm118 = vcmp.eq.s32.totalorder %v87, %v90
    %vm119 = vcmp.eq.s32.totalorder %v87, %v93
    %vm120 = vcmp.eq.s32.totalorder %v87, %v96
    %vm121 = vcmp.eq.s32.totalorder %v87, %v99
    %vm122 = vcmp.eq.s32.totalorder %v87, %v102
    %vm123 = vcmp.eq.s32.totalorder %v87, %v105
    %vm124 = vcmp.eq.s32.totalorder %v87, %v108
    %vm125 = vcmp.eq.s32.totalorder %v87, %v111
    %vm126 = vcmp.eq.s32.totalorder %v87, %v114
    %vm127 = vcmp.eq.s32.totalorder %v87, %v117
    %v128 = vsel %vm118, 1, 0
    %v129 = vsel %vm119, 1, 0
    %v130 = vsel %vm120, 1, 0
    %v131 = vsel %vm121, 1, 0
    %v132 = vsel %vm122, 1, 0
    %v133 = vsel %vm123, 1, 0
    %v134 = vsel %vm124, 1, 0
    %v135 = vsel %vm125, 1, 0
    %v136 = vsel %vm126, 1, 0
    %v137 = vsel %vm127, 1, 0
    %v138 = vcvt.s32.f32 %v128
    %v139 = vcvt.s32.f32 %v129
    %v140 = vcvt.s32.f32 %v130
    %v141 = vcvt.s32.f32 %v131
    %v142 = vcvt.s32.f32 %v132
    %v143 = vcvt.s32.f32 %v133
    %v144 = vcvt.s32.f32 %v134
    %v145 = vcvt.s32.f32 %v135
    %v146 = vcvt.s32.f32 %v136
    %v147 = vcvt.s32.f32 %v137
    %vm148 = vcmask 261120
    %v150 = vsel %vm148, %v138, 0
    %v153 = vsel %vm148, %v139, 0
    %v156 = vsel %vm148, %v140, 0
    %v159 = vsel %vm148, %v141, 0
    %v162 = vsel %vm148, %v142, 0
    %v165 = vsel %vm148, %v143, 0
    %v168 = vsel %vm148, %v144, 0
    %v171 = vsel %vm148, %v145, 0
    %v174 = vsel %vm148, %v146, 0
    %v177 = vsel %vm148, %v147, 0
    %179 = vmatpush.msra.mxu0 0.0
    %180 = vmatpush.msra.mxu0 0.0
    %181 = vmatpush.msra.mxu0 0.0
    %182 = vmatpush.msra.mxu0 0.0
    %183 = vmatpush.msra.mxu0 0.0
    %184 = vmatpush.msra.mxu0 0.0
    %185 = vmatpush.msra.mxu0 0.0
    %186 = vmatpush.msra.mxu0 0.0
    %187 = vmatpush.msra.mxu0 0.0
    %188 = vmatpush.msra.mxu0 0.0
    %189 = vmatpush.msra.mxu0 0.0
    %190 = vmatpush.msra.mxu0 0.0
    %191 = vmatpush.msra.mxu0 %v74
    %192 = vmatpush.msra.mxu0 %v73
    %193 = vmatpush.msra.mxu0 %v72
    %194 = vmatpush.msra.mxu0 %v71
    %195 = vmatmul.f32.gmra.mxu0 %v150
    %v196 = vpop.f32.mrf.mxu0
    %v197 = vadd.f32 0.0, %v196
    %198 = vmatmul.f32.gmra.mxu0 %v153
    %v199 = vpop.f32.mrf.mxu0
    %v200 = vadd.f32 0.0, %v199
    %201 = vmatmul.f32.gmra.mxu0 %v156
    %v202 = vpop.f32.mrf.mxu0
    %v203 = vadd.f32 0.0, %v202
    %204 = vmatmul.f32.gmra.mxu0 %v159
    %v205 = vpop.f32.mrf.mxu0
    %v206 = vadd.f32 0.0, %v205
    %207 = vmatmul.f32.gmra.mxu0 %v162
    %v208 = vpop.f32.mrf.mxu0
    %v209 = vadd.f32 0.0, %v208
    %210 = vmatmul.f32.gmra.mxu0 %v165
    %v211 = vpop.f32.mrf.mxu0
    %v212 = vadd.f32 0.0, %v211
    %213 = vmatmul.f32.gmra.mxu0 %v168
    %v214 = vpop.f32.mrf.mxu0
    %v215 = vadd.f32 0.0, %v214
    %216 = vmatmul.f32.gmra.mxu0 %v171
    %v217 = vpop.f32.mrf.mxu0
    %v218 = vadd.f32 0.0, %v217
    %219 = vmatmul.f32.gmra.mxu0 %v174
    %v220 = vpop.f32.mrf.mxu0
    %v221 = vadd.f32 0.0, %v220
    %222 = vmatmul.f32.gmra.mxu0 %v177
    %v223 = vpop.f32.mrf.mxu0
    %v224 = vadd.f32 0.0, %v223
    %225 = vdwg.mxu0
    %v226 = vld [vmem:[%s3] sm:$0xf]
    %v227 = vld [vmem:[%s3 + $0x4] sm:$0xf]
    %v228 = vld [vmem:[%s3 + $0x8] sm:$0xf]
    %v229 = vld [vmem:[%s3 + $0xc] sm:$0xf]
    %v230 = vld [vmem:[#allocation6] sm:$0xf]
    %v231 = vld [vmem:[#allocation6 + $0x4] sm:$0xf]
    %v232 = vld [vmem:[#allocation6 + $0x8] sm:$0xf]
    %v233 = vld [vmem:[#allocation6 + $0xc] sm:$0xf]
    %v234 = vld [vmem:[%s5] sm:$0x1]
    %v235 = vpack.c.bf16 %v206, %v203
    %v236 = vpack.c.bf16 %v212, %v209
    %v237 = vpack.c.bf16 %v218, %v215
    %v238 = vpack.c.bf16 %v224, %v221
    %v240 = vperm.slane %v234, 0
    %v246 = vunpack.c.l.b16 %v226
    %v247 = vunpack.c.l.b16 %v227
    %v248 = vunpack.c.l.b16 %v228
    %v249 = vunpack.c.l.b16 %v229
    %v250 = vpack.c.b16 %v247, %v246
    %v251 = vpack.c.b16 %v249, %v248
    %v255 = vsel %vm148, %v235, 0
    %v258 = vsel %vm148, %v236, 0
    %v261 = vsel %vm148, %v237, 0
    %v264 = vsel %vm148, %v238, 0
    %266 = vmatpush.bf16.msra.mxu0 0
    %267 = vmatpush.bf16.msra.mxu0 0
    %268 = vmatpush.bf16.msra.mxu0 0
    %269 = vmatpush.bf16.msra.mxu0 0
    %270 = vmatpush.bf16.msra.mxu0 0
    %271 = vmatpush.bf16.msra.mxu0 0
    %272 = vmatpush.bf16.msra.mxu0 %v251
    %273 = vmatpush.bf16.msra.mxu0 %v250
    %274 = vmatmul.bf16.gmra.mxu0 %v255
    %v275 = vpop.f32.mrf.mxu0
    %v276 = vadd.f32 %v240, %v275
    %v277 = vpop.f32.mrf.mxu0
    %v278 = vadd.f32 %v240, %v277
    %279 = vmatmul.bf16.gmra.mxu0 %v258
    %v280 = vpop.f32.mrf.mxu0
    %v281 = vadd.f32 %v240, %v280
    %v282 = vpop.f32.mrf.mxu0
    %v283 = vadd.f32 %v240, %v282
    %284 = vmatmul.bf16.gmra.mxu0 %v261
    %v285 = vpop.f32.mrf.mxu0
    %v286 = vadd.f32 %v240, %v285
    %v287 = vpop.f32.mrf.mxu0
    %v288 = vadd.f32 %v240, %v287
    %289 = vmatmul.bf16.gmra.mxu0 %v264
    %v290 = vpop.f32.mrf.mxu0
    %v291 = vadd.f32 %v240, %v290
    %v292 = vpop.f32.mrf.mxu0
    %v293 = vadd.f32 %v240, %v292
    %294 = vdwg.mxu0
    %295 = vset.pattern.permute.xlu0 0
    %296 = vperm.xlu0 %295, %v85
    %v297 = vpop.permute.xlu0 %296
    %vm298 = vcmp.ge.s32.totalorder %v87, %v297
    %v299 = vsel %vm298, 1.0, 0.0
    %v300 = vld [vmem:[%s6] sm:$0x1]
    %v301 = vld [vmem:[#allocation2] sm:$0x1]
    %v306 = vunpack.c.l.b16 %v230
    %v307 = vunpack.c.l.b16 %v231
    %v308 = vunpack.c.l.b16 %v232
    %v309 = vunpack.c.l.b16 %v233
    %v310 = vpack.c.b16 %v307, %v306
    %v311 = vpack.c.b16 %v309, %v308
    %v315 = vsel %vm148, 0, 0
    %317 = vmatpush.bf16.msra.mxu0 0
    %318 = vmatpush.bf16.msra.mxu0 0
    %319 = vmatpush.bf16.msra.mxu0 0
    %320 = vmatpush.bf16.msra.mxu0 0
    %321 = vmatpush.bf16.msra.mxu0 0
    %322 = vmatpush.bf16.msra.mxu0 0
    %323 = vmatpush.bf16.msra.mxu0 %v311
    %324 = vmatpush.bf16.msra.mxu0 %v310
    %325 = vmatmul.bf16.gmra.mxu0 %v315
    %v326 = vpop.f32.mrf.mxu0
    %v327 = vadd.f32 0.0, %v326
    %v328 = vpop.f32.mrf.mxu0
    %329 = vdwg.mxu0
    %v330 = vadd.f32 %v276, %v327
    %v331 = vxor.u32 %v330, 2147483648
    %v332 = vmul.f32 %v331, 1.442695
    %v333 = vpow.pop %v332
    %v334 = vadd.f32 %v333, 1.0
    %v335 = vrcp.pop %v334
    %v336 = vmul.f32 %v334, %v335
    %v337 = vsub.f32 1.0, %v336
    %v338 = vmul.f32 %v335, %v337
    %v339 = vadd.f32 %v335, %v338
    %vm340 = vweird.f32 %v334
    %vm341 = vweird.f32 %v335
    %vm342 = vmor %vm340, %vm341
    %v343 = vsel %vm342, %v335, %v339
    %v344 = vand.u32 2147483647, %v334
    %vm345 = vcmp.eq.f32.partialorder %v344, 8.507059e+37
    %v346 = vand.u32 %v334, 2147483648
    %v347 = vor.u32 1.1754944e-38, %v346
    %v348 = vsel %vm345, %v347, %v343
    %v349 = vmul.f32 1.0, %v348
    %v350 = vtanh.pop %v330
    %v351 = vmul.f32 %v349, 0.0
    %353 = vrot.lane.b32.xlu0 %v350, 32
    %v354 = vpop.permute.xlu0 %353
    %v356 = vmul.f32 %v349, %v354
    %358 = vrot.lane.b32.xlu0 %v356, 32
    %v359 = vpop.permute.xlu0 %358
    %v361 = vadd.f32 %v351, %v359
    %v362 = vtanh.pop %v361
    %364 = vrot.lane.b32.xlu0 %v362, 32
    %v365 = vpop.permute.xlu0 %364
    %v367 = vmul.f32 %v349, %v365
    %v369 = vperm.slane %v300, 0
    %370 = vrot.lane.b32.xlu0 %v369, 64
    %v371 = vpop.permute.xlu0 %370
    %v373 = vmul.f32 %v367, %v371
    %375 = vrot.lane.b32.xlu0 %v373, 64
    %v376 = vpop.permute.xlu0 %375
    %v378 = vsel %vm148, %v376, 0.0
    %379 = vadd.xlane.f32.xlu0 %v378
    %v380 = vpop.xlane.xlu0 %379
    %v382 = vperm.slane %v301, 0
    %v384 = vadd.f32 %v380, %v382
    %v385 = vsub.f32 1.0, %v299
    %v386 = vmul.f32 %v385, %v384
    %v387 = vmul.f32 %v299, 1e-09
    %v388 = vadd.f32 %v386, %v387
    %v389 = vpack.c.bf16 %v367, %v367
    %391 = vrot.lane.b32.xlu0 %v389, 64
    %v392 = vpop.permute.xlu0 %391
    %v394 = vsel %vm148, %v392, 0
    %396 = vmatpush.bf16.msra.mxu0 0
    %397 = vmatpush.bf16.msra.mxu0 0
    %398 = vmatpush.bf16.msra.mxu0 0
    %399 = vmatpush.bf16.msra.mxu0 0
    %400 = vmatpush.bf16.msra.mxu0 0
    %401 = vmatpush.bf16.msra.mxu0 0
    %402 = vmatpush.bf16.msra.mxu0 %v311
    %403 = vmatpush.bf16.msra.mxu0 %v310
    %404 = vmatmul.bf16.gmra.mxu0 %v394
    %v405 = vpop.f32.mrf.mxu0
    %v406 = vadd.f32 0.0, %v405
    %v407 = vpop.f32.mrf.mxu0
    %408 = vdwg.mxu0
    %v409 = vadd.f32 %v278, %v406
    %v410 = vxor.u32 %v409, 2147483648
    %v411 = vmul.f32 %v410, 1.442695
    %v412 = vpow.pop %v411
    %v413 = vadd.f32 %v412, 1.0
    %v414 = vrcp.pop %v413
    %v415 = vmul.f32 %v413, %v414
    %v416 = vsub.f32 1.0, %v415
    %v417 = vmul.f32 %v414, %v416
    %v418 = vadd.f32 %v414, %v417
    %vm419 = vweird.f32 %v413
    %vm420 = vweird.f32 %v414
    %vm421 = vmor %vm419, %vm420
    %v422 = vsel %vm421, %v414, %v418
    %v423 = vand.u32 2147483647, %v413
    %vm424 = vcmp.eq.f32.partialorder %v423, 8.507059e+37
    %v425 = vand.u32 %v413, 2147483648
    %v426 = vor.u32 1.1754944e-38, %v425
    %v427 = vsel %vm424, %v426, %v422
    %v428 = vmul.f32 1.0, %v427
    %v429 = vtanh.pop %v409
    %v430 = vmul.f32 %v428, %v361
    %432 = vrot.lane.b32.xlu0 %v429, 32
    %v433 = vpop.permute.xlu0 %432
    %v435 = vmul.f32 %v428, %v433
    %437 = vrot.lane.b32.xlu0 %v435, 32
    %v438 = vpop.permute.xlu0 %437
    %v440 = vadd.f32 %v430, %v438
    %v441 = vtanh.pop %v440
    %443 = vrot.lane.b32.xlu0 %v441, 32
    %v444 = vpop.permute.xlu0 %443
    %v446 = vmul.f32 %v428, %v444
    %v447 = vmul.f32 %v446, %v371
    %449 = vrot.lane.b32.xlu0 %v447, 64
    %v450 = vpop.permute.xlu0 %449
    %v452 = vsel %vm148, %v450, 0.0
    %453 = vadd.xlane.f32.xlu0 %v452
    %v454 = vpop.xlane.xlu0 %453
    %v455 = vadd.f32 %v454, %v382
    %457 = vrot.lane.b32.xlu0 %v455, 1
    %v458 = vpop.permute.xlu0 %457
    %v460 = vmul.f32 %v385, %v458
    %v461 = vadd.f32 %v460, %v387
    %463 = vrot.lane.b32.xlu0 %v461, 127
    %v464 = vpop.permute.xlu0 %463
    %v466 = vmax.f32 %v388, %v464
    %v467 = vsub.f32 %v388, %v466
    %v468 = vmul.f32 %v467, 1.442695
    %v469 = vpow.pop %v468
    %471 = vrot.lane.b32.xlu0 %v466, 1
    %v472 = vpop.permute.xlu0 %471
    %v474 = vsub.f32 %v461, %v472
    %v475 = vmul.f32 %v474, 1.442695
    %v476 = vpow.pop %v475
    %478 = vrot.lane.b32.xlu0 %v476, 127
    %v479 = vpop.permute.xlu0 %478
    %v481 = vadd.f32 %v469, %v479
    %483 = vset.pattern.permute.xlu0 0
    %484 = vperm.xlu0 %483, %v469
    %v485 = vpop.permute.xlu0 %484
    %v487 = vmul.f32 %v485, %v367
    %488 = vset.pattern.permute.xlu0 1
    %489 = vperm.xlu0 %488, %v476
    %v490 = vpop.permute.xlu0 %489
    %v492 = vmul.f32 %v490, %v446
    %v493 = vadd.f32 %v487, %v492
    %v494 = vpack.c.bf16 %v446, %v446
    %496 = vrot.lane.b32.xlu0 %v494, 64
    %v497 = vpop.permute.xlu0 %496
    %v499 = vsel %vm148, %v497, 0
    %501 = vmatpush.bf16.msra.mxu0 0
    %502 = vmatpush.bf16.msra.mxu0 0
    %503 = vmatpush.bf16.msra.mxu0 0
    %504 = vmatpush.bf16.msra.mxu0 0
    %505 = vmatpush.bf16.msra.mxu0 0
    %506 = vmatpush.bf16.msra.mxu0 0
    %507 = vmatpush.bf16.msra.mxu0 %v311
    %508 = vmatpush.bf16.msra.mxu0 %v310
    %509 = vmatmul.bf16.gmra.mxu0 %v499
    %v510 = vpop.f32.mrf.mxu0
    %v511 = vadd.f32 0.0, %v510
    %v512 = vpop.f32.mrf.mxu0
    %513 = vdwg.mxu0
    %v514 = vadd.f32 %v281, %v511
    %v515 = vxor.u32 %v514, 2147483648
    %v516 = vmul.f32 %v515, 1.442695
    %v517 = vpow.pop %v516
    %v518 = vadd.f32 %v517, 1.0
    %v519 = vrcp.pop %v518
    %v520 = vmul.f32 %v518, %v519
    %v521 = vsub.f32 1.0, %v520
    %v522 = vmul.f32 %v519, %v521
    %v523 = vadd.f32 %v519, %v522
    %vm524 = vweird.f32 %v518
    %vm525 = vweird.f32 %v519
    %vm526 = vmor %vm524, %vm525
    %v527 = vsel %vm526, %v519, %v523
    %v528 = vand.u32 2147483647, %v518
    %vm529 = vcmp.eq.f32.partialorder %v528, 8.507059e+37
    %v530 = vand.u32 %v518, 2147483648
    %v531 = vor.u32 1.1754944e-38, %v530
    %v532 = vsel %vm529, %v531, %v527
    %v533 = vmul.f32 1.0, %v532
    %v534 = vtanh.pop %v514
    %v535 = vmul.f32 %v533, %v440
    %537 = vrot.lane.b32.xlu0 %v534, 32
    %v538 = vpop.permute.xlu0 %537
    %v540 = vmul.f32 %v533, %v538
    %542 = vrot.lane.b32.xlu0 %v540, 32
    %v543 = vpop.permute.xlu0 %542
    %v545 = vadd.f32 %v535, %v543
    %v546 = vtanh.pop %v545
    %548 = vrot.lane.b32.xlu0 %v546, 32
    %v549 = vpop.permute.xlu0 %548
    %v551 = vmul.f32 %v533, %v549
    %v552 = vmul.f32 %v551, %v371
    %554 = vrot.lane.b32.xlu0 %v552, 64
    %v555 = vpop.permute.xlu0 %554
    %v557 = vsel %vm148, %v555, 0.0
    %558 = vadd.xlane.f32.xlu0 %v557
    %v559 = vpop.xlane.xlu0 %558
    %v560 = vadd.f32 %v559, %v382
    %562 = vrot.lane.b32.xlu0 %v560, 2
    %v563 = vpop.permute.xlu0 %562
    %v565 = vmul.f32 %v385, %v563
    %v566 = vadd.f32 %v565, %v387
    %568 = vrot.lane.b32.xlu0 %v566, 126
    %v569 = vpop.permute.xlu0 %568
    %v571 = vmax.f32 %v466, %v569
    %v572 = vsub.f32 %v466, %v571
    %v573 = vmul.f32 %v572, 1.442695
    %v574 = vpow.pop %v573
    %576 = vrot.lane.b32.xlu0 %v571, 2
    %v577 = vpop.permute.xlu0 %576
    %v579 = vsub.f32 %v566, %v577
    %v580 = vmul.f32 %v579, 1.442695
    %v581 = vpow.pop %v580
    %v582 = vmul.f32 %v574, %v481
    %584 = vrot.lane.b32.xlu0 %v581, 126
    %v585 = vpop.permute.xlu0 %584
    %v587 = vadd.f32 %v582, %v585
    %589 = vset.pattern.permute.xlu0 0
    %590 = vperm.xlu0 %589, %v574
    %v591 = vpop.permute.xlu0 %590
    %v593 = vmul.f32 %v591, %v493
    %594 = vset.pattern.permute.xlu0 2
    %595 = vperm.xlu0 %594, %v581
    %v596 = vpop.permute.xlu0 %595
    %v598 = vmul.f32 %v596, %v551
    %v599 = vadd.f32 %v593, %v598
    %v600 = vpack.c.bf16 %v551, %v551
    %602 = vrot.lane.b32.xlu0 %v600, 64
    %v603 = vpop.permute.xlu0 %602
    %v605 = vsel %vm148, %v603, 0
    %607 = vmatpush.bf16.msra.mxu0 0
    %608 = vmatpush.bf16.msra.mxu0 0
    %609 = vmatpush.bf16.msra.mxu0 0
    %610 = vmatpush.bf16.msra.mxu0 0
    %611 = vmatpush.bf16.msra.mxu0 0
    %612 = vmatpush.bf16.msra.mxu0 0
    %613 = vmatpush.bf16.msra.mxu0 %v311
    %614 = vmatpush.bf16.msra.mxu0 %v310
    %615 = vmatmul.bf16.gmra.mxu0 %v605
    %v616 = vpop.f32.mrf.mxu0
    %v617 = vadd.f32 0.0, %v616
    %v618 = vpop.f32.mrf.mxu0
    %619 = vdwg.mxu0
    %v620 = vadd.f32 %v283, %v617
    %v621 = vxor.u32 %v620, 2147483648
    %v622 = vmul.f32 %v621, 1.442695
    %v623 = vpow.pop %v622
    %v624 = vadd.f32 %v623, 1.0
    %v625 = vrcp.pop %v624
    %v626 = vmul.f32 %v624, %v625
    %v627 = vsub.f32 1.0, %v626
    %v628 = vmul.f32 %v625, %v627
    %v629 = vadd.f32 %v625, %v628
    %vm630 = vweird.f32 %v624
    %vm631 = vweird.f32 %v625
    %vm632 = vmor %vm630, %vm631
    %v633 = vsel %vm632, %v625, %v629
    %v634 = vand.u32 2147483647, %v624
    %vm635 = vcmp.eq.f32.partialorder %v634, 8.507059e+37
    %v636 = vand.u32 %v624, 2147483648
    %v637 = vor.u32 1.1754944e-38, %v636
    %v638 = vsel %vm635, %v637, %v633
    %v639 = vmul.f32 1.0, %v638
    %v640 = vtanh.pop %v620
    %v641 = vmul.f32 %v639, %v545
    %643 = vrot.lane.b32.xlu0 %v640, 32
    %v644 = vpop.permute.xlu0 %643
    %v646 = vmul.f32 %v639, %v644
    %648 = vrot.lane.b32.xlu0 %v646, 32
    %v649 = vpop.permute.xlu0 %648
    %v651 = vadd.f32 %v641, %v649
    %v652 = vtanh.pop %v651
    %654 = vrot.lane.b32.xlu0 %v652, 32
    %v655 = vpop.permute.xlu0 %654
    %v657 = vmul.f32 %v639, %v655
    %v658 = vmul.f32 %v657, %v371
    %660 = vrot.lane.b32.xlu0 %v658, 64
    %v661 = vpop.permute.xlu0 %660
    %v663 = vsel %vm148, %v661, 0.0
    %664 = vadd.xlane.f32.xlu0 %v663
    %v665 = vpop.xlane.xlu0 %664
    %v666 = vadd.f32 %v665, %v382
    %668 = vrot.lane.b32.xlu0 %v666, 3
    %v669 = vpop.permute.xlu0 %668
    %v671 = vmul.f32 %v385, %v669
    %v672 = vadd.f32 %v671, %v387
    %674 = vrot.lane.b32.xlu0 %v672, 125
    %v675 = vpop.permute.xlu0 %674
    %v677 = vmax.f32 %v571, %v675
    %v678 = vsub.f32 %v571, %v677
    %v679 = vmul.f32 %v678, 1.442695
    %v680 = vpow.pop %v679
    %682 = vrot.lane.b32.xlu0 %v677, 3
    %v683 = vpop.permute.xlu0 %682
    %v685 = vsub.f32 %v672, %v683
    %v686 = vmul.f32 %v685, 1.442695
    %v687 = vpow.pop %v686
    %v688 = vmul.f32 %v680, %v587
    %690 = vrot.lane.b32.xlu0 %v687, 125
    %v691 = vpop.permute.xlu0 %690
    %v693 = vadd.f32 %v688, %v691
    %695 = vset.pattern.permute.xlu0 0
    %696 = vperm.xlu0 %695, %v680
    %v697 = vpop.permute.xlu0 %696
    %v699 = vmul.f32 %v697, %v599
    %700 = vset.pattern.permute.xlu0 3
    %701 = vperm.xlu0 %700, %v687
    %v702 = vpop.permute.xlu0 %701
    %v704 = vmul.f32 %v702, %v657
    %v705 = vadd.f32 %v699, %v704
    %v706 = vpack.c.bf16 %v657, %v657
    %708 = vrot.lane.b32.xlu0 %v706, 64
    %v709 = vpop.permute.xlu0 %708
    %v711 = vsel %vm148, %v709, 0
    %713 = vmatpush.bf16.msra.mxu0 0
    %714 = vmatpush.bf16.msra.mxu0 0
    %715 = vmatpush.bf16.msra.mxu0 0
    %716 = vmatpush.bf16.msra.mxu0 0
    %717 = vmatpush.bf16.msra.mxu0 0
    %718 = vmatpush.bf16.msra.mxu0 0
    %719 = vmatpush.bf16.msra.mxu0 %v311
    %720 = vmatpush.bf16.msra.mxu0 %v310
    %721 = vmatmul.bf16.gmra.mxu0 %v711
    %v722 = vpop.f32.mrf.mxu0
    %v723 = vadd.f32 0.0, %v722
    %v724 = vpop.f32.mrf.mxu0
    %725 = vdwg.mxu0
    %v726 = vadd.f32 %v286, %v723
    %v727 = vxor.u32 %v726, 2147483648
    %v728 = vmul.f32 %v727, 1.442695
    %v729 = vpow.pop %v728
    %v730 = vadd.f32 %v729, 1.0
    %v731 = vrcp.pop %v730
    %v732 = vmul.f32 %v730, %v731
    %v733 = vsub.f32 1.0, %v732
    %v734 = vmul.f32 %v731, %v733
    %v735 = vadd.f32 %v731, %v734
    %vm736 = vweird.f32 %v730
    %vm737 = vweird.f32 %v731
    %vm738 = vmor %vm736, %vm737
    %v739 = vsel %vm738, %v731, %v735
    %v740 = vand.u32 2147483647, %v730
    %vm741 = vcmp.eq.f32.partialorder %v740, 8.507059e+37
    %v742 = vand.u32 %v730, 2147483648
    %v743 = vor.u32 1.1754944e-38, %v742
    %v744 = vsel %vm741, %v743, %v739
    %v745 = vmul.f32 1.0, %v744
    %v746 = vtanh.pop %v726
    %v747 = vmul.f32 %v745, %v651
    %749 = vrot.lane.b32.xlu0 %v746, 32
    %v750 = vpop.permute.xlu0 %749
    %v752 = vmul.f32 %v745, %v750
    %754 = vrot.lane.b32.xlu0 %v752, 32
    %v755 = vpop.permute.xlu0 %754
    %v757 = vadd.f32 %v747, %v755
    %v758 = vtanh.pop %v757
    %760 = vrot.lane.b32.xlu0 %v758, 32
    %v761 = vpop.permute.xlu0 %760
    %v763 = vmul.f32 %v745, %v761
    %v764 = vmul.f32 %v763, %v371
    %766 = vrot.lane.b32.xlu0 %v764, 64
    %v767 = vpop.permute.xlu0 %766
    %v769 = vsel %vm148, %v767, 0.0
    %770 = vadd.xlane.f32.xlu0 %v769
    %v771 = vpop.xlane.xlu0 %770
    %v772 = vadd.f32 %v771, %v382
    %774 = vrot.lane.b32.xlu0 %v772, 4
    %v775 = vpop.permute.xlu0 %774
    %v777 = vmul.f32 %v385, %v775
    %v778 = vadd.f32 %v777, %v387
    %780 = vrot.lane.b32.xlu0 %v778, 124
    %v781 = vpop.permute.xlu0 %780
    %v783 = vmax.f32 %v677, %v781
    %v784 = vsub.f32 %v677, %v783
    %v785 = vmul.f32 %v784, 1.442695
    %v786 = vpow.pop %v785
    %788 = vrot.lane.b32.xlu0 %v783, 4
    %v789 = vpop.permute.xlu0 %788
    %v791 = vsub.f32 %v778, %v789
    %v792 = vmul.f32 %v791, 1.442695
    %v793 = vpow.pop %v792
    %v794 = vmul.f32 %v786, %v693
    %796 = vrot.lane.b32.xlu0 %v793, 124
    %v797 = vpop.permute.xlu0 %796
    %v799 = vadd.f32 %v794, %v797
    %801 = vset.pattern.permute.xlu0 0
    %802 = vperm.xlu0 %801, %v786
    %v803 = vpop.permute.xlu0 %802
    %v805 = vmul.f32 %v803, %v705
    %806 = vset.pattern.permute.xlu0 4
    %807 = vperm.xlu0 %806, %v793
    %v808 = vpop.permute.xlu0 %807
    %v810 = vmul.f32 %v808, %v763
    %v811 = vadd.f32 %v805, %v810
    %v812 = vpack.c.bf16 %v763, %v763
    %814 = vrot.lane.b32.xlu0 %v812, 64
    %v815 = vpop.permute.xlu0 %814
    %v817 = vsel %vm148, %v815, 0
    %819 = vmatpush.bf16.msra.mxu0 0
    %820 = vmatpush.bf16.msra.mxu0 0
    %821 = vmatpush.bf16.msra.mxu0 0
    %822 = vmatpush.bf16.msra.mxu0 0
    %823 = vmatpush.bf16.msra.mxu0 0
    %824 = vmatpush.bf16.msra.mxu0 0
    %825 = vmatpush.bf16.msra.mxu0 %v311
    %826 = vmatpush.bf16.msra.mxu0 %v310
    %827 = vmatmul.bf16.gmra.mxu0 %v817
    %v828 = vpop.f32.mrf.mxu0
    %v829 = vadd.f32 0.0, %v828
    %v830 = vpop.f32.mrf.mxu0
    %831 = vdwg.mxu0
    %v832 = vadd.f32 %v288, %v829
    %v833 = vxor.u32 %v832, 2147483648
    %v834 = vmul.f32 %v833, 1.442695
    %v835 = vpow.pop %v834
    %v836 = vadd.f32 %v835, 1.0
    %v837 = vrcp.pop %v836
    %v838 = vmul.f32 %v836, %v837
    %v839 = vsub.f32 1.0, %v838
    %v840 = vmul.f32 %v837, %v839
    %v841 = vadd.f32 %v837, %v840
    %vm842 = vweird.f32 %v836
    %vm843 = vweird.f32 %v837
    %vm844 = vmor %vm842, %vm843
    %v845 = vsel %vm844, %v837, %v841
    %v846 = vand.u32 2147483647, %v836
    %vm847 = vcmp.eq.f32.partialorder %v846, 8.507059e+37
    %v848 = vand.u32 %v836, 2147483648
    %v849 = vor.u32 1.1754944e-38, %v848
    %v850 = vsel %vm847, %v849, %v845
    %v851 = vmul.f32 1.0, %v850
    %v852 = vtanh.pop %v832
    %v853 = vmul.f32 %v851, %v757
    %855 = vrot.lane.b32.xlu0 %v852, 32
    %v856 = vpop.permute.xlu0 %855
    %v858 = vmul.f32 %v851, %v856
    %860 = vrot.lane.b32.xlu0 %v858, 32
    %v861 = vpop.permute.xlu0 %860
    %v863 = vadd.f32 %v853, %v861
    %v864 = vtanh.pop %v863
    %866 = vrot.lane.b32.xlu0 %v864, 32
    %v867 = vpop.permute.xlu0 %866
    %v869 = vmul.f32 %v851, %v867
    %v870 = vmul.f32 %v869, %v371
    %872 = vrot.lane.b32.xlu0 %v870, 64
    %v873 = vpop.permute.xlu0 %872
    %v875 = vsel %vm148, %v873, 0.0
    %876 = vadd.xlane.f32.xlu0 %v875
    %v877 = vpop.xlane.xlu0 %876
    %v878 = vadd.f32 %v877, %v382
    %880 = vrot.lane.b32.xlu0 %v878, 5
    %v881 = vpop.permute.xlu0 %880
    %v883 = vmul.f32 %v385, %v881
    %v884 = vadd.f32 %v883, %v387
    %886 = vrot.lane.b32.xlu0 %v884, 123
    %v887 = vpop.permute.xlu0 %886
    %v889 = vmax.f32 %v783, %v887
    %v890 = vsub.f32 %v783, %v889
    %v891 = vmul.f32 %v890, 1.442695
    %v892 = vpow.pop %v891
    %894 = vrot.lane.b32.xlu0 %v889, 5
    %v895 = vpop.permute.xlu0 %894
    %v897 = vsub.f32 %v884, %v895
    %v898 = vmul.f32 %v897, 1.442695
    %v899 = vpow.pop %v898
    %v900 = vmul.f32 %v892, %v799
    %902 = vrot.lane.b32.xlu0 %v899, 123
    %v903 = vpop.permute.xlu0 %902
    %v905 = vadd.f32 %v900, %v903
    %907 = vset.pattern.permute.xlu0 0
    %908 = vperm.xlu0 %907, %v892
    %v909 = vpop.permute.xlu0 %908
    %v911 = vmul.f32 %v909, %v811
    %912 = vset.pattern.permute.xlu0 5
    %913 = vperm.xlu0 %912, %v899
    %v914 = vpop.permute.xlu0 %913
    %v916 = vmul.f32 %v914, %v869
    %v917 = vadd.f32 %v911, %v916
    %v918 = vpack.c.bf16 %v869, %v869
    %920 = vrot.lane.b32.xlu0 %v918, 64
    %v921 = vpop.permute.xlu0 %920
    %v923 = vsel %vm148, %v921, 0
    %925 = vmatpush.bf16.msra.mxu0 0
    %926 = vmatpush.bf16.msra.mxu0 0
    %927 = vmatpush.bf16.msra.mxu0 0
    %928 = vmatpush.bf16.msra.mxu0 0
    %929 = vmatpush.bf16.msra.mxu0 0
    %930 = vmatpush.bf16.msra.mxu0 0
    %931 = vmatpush.bf16.msra.mxu0 %v311
    %932 = vmatpush.bf16.msra.mxu0 %v310
    %933 = vmatmul.bf16.gmra.mxu0 %v923
    %v934 = vpop.f32.mrf.mxu0
    %v935 = vadd.f32 0.0, %v934
    %v936 = vpop.f32.mrf.mxu0
    %937 = vdwg.mxu0
    %v938 = vadd.f32 %v291, %v935
    %v939 = vxor.u32 %v938, 2147483648
    %v940 = vmul.f32 %v939, 1.442695
    %v941 = vpow.pop %v940
    %v942 = vadd.f32 %v941, 1.0
    %v943 = vrcp.pop %v942
    %v944 = vmul.f32 %v942, %v943
    %v945 = vsub.f32 1.0, %v944
    %v946 = vmul.f32 %v943, %v945
    %v947 = vadd.f32 %v943, %v946
    %vm948 = vweird.f32 %v942
    %vm949 = vweird.f32 %v943
    %vm950 = vmor %vm948, %vm949
    %v951 = vsel %vm950, %v943, %v947
    %v952 = vand.u32 2147483647, %v942
    %vm953 = vcmp.eq.f32.partialorder %v952, 8.507059e+37
    %v954 = vand.u32 %v942, 2147483648
    %v955 = vor.u32 1.1754944e-38, %v954
    %v956 = vsel %vm953, %v955, %v951
    %v957 = vmul.f32 1.0, %v956
    %v958 = vtanh.pop %v938
    %v959 = vmul.f32 %v957, %v863
    %961 = vrot.lane.b32.xlu0 %v958, 32
    %v962 = vpop.permute.xlu0 %961
    %v964 = vmul.f32 %v957, %v962
    %966 = vrot.lane.b32.xlu0 %v964, 32
    %v967 = vpop.permute.xlu0 %966
    %v969 = vadd.f32 %v959, %v967
    %v970 = vtanh.pop %v969
    %972 = vrot.lane.b32.xlu0 %v970, 32
    %v973 = vpop.permute.xlu0 %972
    %v975 = vmul.f32 %v957, %v973
    %v976 = vmul.f32 %v975, %v371
    %978 = vrot.lane.b32.xlu0 %v976, 64
    %v979 = vpop.permute.xlu0 %978
    %v981 = vsel %vm148, %v979, 0.0
    %982 = vadd.xlane.f32.xlu0 %v981
    %v983 = vpop.xlane.xlu0 %982
    %v984 = vadd.f32 %v983, %v382
    %986 = vrot.lane.b32.xlu0 %v984, 6
    %v987 = vpop.permute.xlu0 %986
    %v989 = vmul.f32 %v385, %v987
    %v990 = vadd.f32 %v989, %v387
    %992 = vrot.lane.b32.xlu0 %v990, 122
    %v993 = vpop.permute.xlu0 %992
    %v995 = vmax.f32 %v889, %v993
    %v996 = vsub.f32 %v889, %v995
    %v997 = vmul.f32 %v996, 1.442695
    %v998 = vpow.pop %v997
    %1000 = vrot.lane.b32.xlu0 %v995, 6
    %v1001 = vpop.permute.xlu0 %1000
    %v1003 = vsub.f32 %v990, %v1001
    %v1004 = vmul.f32 %v1003, 1.442695
    %v1005 = vpow.pop %v1004
    %v1006 = vmul.f32 %v998, %v905
    %1008 = vrot.lane.b32.xlu0 %v1005, 122
    %v1009 = vpop.permute.xlu0 %1008
    %v1011 = vadd.f32 %v1006, %v1009
    %1013 = vset.pattern.permute.xlu0 0
    %1014 = vperm.xlu0 %1013, %v998
    %v1015 = vpop.permute.xlu0 %1014
    %v1017 = vmul.f32 %v1015, %v917
    %1018 = vset.pattern.permute.xlu0 6
    %1019 = vperm.xlu0 %1018, %v1005
    %v1020 = vpop.permute.xlu0 %1019
    %v1022 = vmul.f32 %v1020, %v975
    %v1023 = vadd.f32 %v1017, %v1022
    %v1024 = vpack.c.bf16 %v975, %v975
    %1026 = vrot.lane.b32.xlu0 %v1024, 64
    %v1027 = vpop.permute.xlu0 %1026
    %v1029 = vsel %vm148, %v1027, 0
    %1031 = vmatpush.bf16.msra.mxu0 0
    %1032 = vmatpush.bf16.msra.mxu0 0
    %1033 = vmatpush.bf16.msra.mxu0 0
    %1034 = vmatpush.bf16.msra.mxu0 0
    %1035 = vmatpush.bf16.msra.mxu0 0
    %1036 = vmatpush.bf16.msra.mxu0 0
    %1037 = vmatpush.bf16.msra.mxu0 %v311
    %1038 = vmatpush.bf16.msra.mxu0 %v310
    %1039 = vmatmul.bf16.gmra.mxu0 %v1029
    %v1040 = vpop.f32.mrf.mxu0
    %v1041 = vadd.f32 0.0, %v1040
    %v1042 = vpop.f32.mrf.mxu0
    %1043 = vdwg.mxu0
    %v1044 = vadd.f32 %v293, %v1041
    %v1045 = vxor.u32 %v1044, 2147483648
    %v1046 = vmul.f32 %v1045, 1.442695
    %v1047 = vpow.pop %v1046
    %v1048 = vadd.f32 %v1047, 1.0
    %v1049 = vrcp.pop %v1048
    %v1050 = vmul.f32 %v1048, %v1049
    %v1051 = vsub.f32 1.0, %v1050
    %v1052 = vmul.f32 %v1049, %v1051
    %v1053 = vadd.f32 %v1049, %v1052
    %vm1054 = vweird.f32 %v1048
    %vm1055 = vweird.f32 %v1049
    %vm1056 = vmor %vm1054, %vm1055
    %v1057 = vsel %vm1056, %v1049, %v1053
    %v1058 = vand.u32 2147483647, %v1048
    %vm1059 = vcmp.eq.f32.partialorder %v1058, 8.507059e+37
    %v1060 = vand.u32 %v1048, 2147483648
    %v1061 = vor.u32 1.1754944e-38, %v1060
    %v1062 = vsel %vm1059, %v1061, %v1057
    %v1063 = vmul.f32 1.0, %v1062
    %v1064 = vtanh.pop %v1044
    %v1065 = vmul.f32 %v1063, %v969
    %1067 = vrot.lane.b32.xlu0 %v1064, 32
    %v1068 = vpop.permute.xlu0 %1067
    %v1070 = vmul.f32 %v1063, %v1068
    %1072 = vrot.lane.b32.xlu0 %v1070, 32
    %v1073 = vpop.permute.xlu0 %1072
    %v1075 = vadd.f32 %v1065, %v1073
    %v1076 = vtanh.pop %v1075
    %1078 = vrot.lane.b32.xlu0 %v1076, 32
    %v1079 = vpop.permute.xlu0 %1078
    %v1081 = vmul.f32 %v1063, %v1079
    %v1082 = vmul.f32 %v1081, %v371
    %1084 = vrot.lane.b32.xlu0 %v1082, 64
    %v1085 = vpop.permute.xlu0 %1084
    %v1087 = vsel %vm148, %v1085, 0.0
    %1088 = vadd.xlane.f32.xlu0 %v1087
    %v1089 = vpop.xlane.xlu0 %1088
    %v1090 = vadd.f32 %v1089, %v382
    %1092 = vrot.lane.b32.xlu0 %v1090, 7
    %v1093 = vpop.permute.xlu0 %1092
    %v1095 = vmul.f32 %v385, %v1093
    %v1096 = vadd.f32 %v1095, %v387
    %1098 = vrot.lane.b32.xlu0 %v1096, 121
    %v1099 = vpop.permute.xlu0 %1098
    %v1101 = vmax.f32 %v995, %v1099
    %v1102 = vsub.f32 %v995, %v1101
    %v1103 = vmul.f32 %v1102, 1.442695
    %v1104 = vpow.pop %v1103
    %1106 = vrot.lane.b32.xlu0 %v1101, 7
    %v1107 = vpop.permute.xlu0 %1106
    %v1109 = vsub.f32 %v1096, %v1107
    %v1110 = vmul.f32 %v1109, 1.442695
    %v1111 = vpow.pop %v1110
    %v1112 = vmul.f32 %v1104, %v1011
    %1114 = vrot.lane.b32.xlu0 %v1111, 121
    %v1115 = vpop.permute.xlu0 %1114
    %v1117 = vadd.f32 %v1112, %v1115
    %1119 = vset.pattern.permute.xlu0 0
    %1120 = vperm.xlu0 %1119, %v1104
    %v1121 = vpop.permute.xlu0 %1120
    %v1123 = vmul.f32 %v1121, %v1023
    %1124 = vset.pattern.permute.xlu0 7
    %1125 = vperm.xlu0 %1124, %v1111
    %v1126 = vpop.permute.xlu0 %1125
    %v1128 = vmul.f32 %v1126, %v1081
    %v1129 = vadd.f32 %v1123, %v1128
    %1131 = vset.pattern.permute.xlu0 0
    %1132 = vperm.xlu0 %1131, %v1117
    %v1133 = vpop.permute.xlu0 %1132
    %v1135 = vrcp.pop %v1133
    %v1136 = vmul.f32 %v1133, %v1135
    %v1137 = vsub.f32 1.0, %v1136
    %v1138 = vmul.f32 %v1135, %v1137
    %v1139 = vadd.f32 %v1135, %v1138
    %vm1140 = vweird.f32 %v1133
    %vm1141 = vweird.f32 %v1135
    %vm1142 = vmor %vm1140, %vm1141
    %v1143 = vsel %vm1142, %v1135, %v1139
    %v1144 = vand.u32 2147483647, %v1133
    %vm1145 = vcmp.eq.f32.partialorder %v1144, 8.507059e+37
    %v1146 = vand.u32 %v1133, 2147483648
    %v1147 = vor.u32 1.1754944e-38, %v1146
    %v1148 = vsel %vm1145, %v1147, %v1143
    %v1149 = vmul.f32 %v1129, %v1148
    %v1150 = vld [vmem:[%s8] sm:$0xf]
    %v1151 = vld [vmem:[%s8 + $0x4] sm:$0xf]
    %v1152 = vld [vmem:[%s8 + $0x8] sm:$0xf]
    %v1153 = vld [vmem:[%s8 + $0xc] sm:$0xf]
    %v1154 = vld [vmem:[%s8 + $0x10] sm:$0xf]
    %v1155 = vld [vmem:[%s8 + $0x14] sm:$0xf]
    %v1156 = vld [vmem:[%s8 + $0x18] sm:$0xf]
    %v1157 = vld [vmem:[%s8 + $0x1c] sm:$0xf]
    %v1158 = vld [vmem:[%s8 + $0x20] sm:$0xf]
    %v1159 = vld [vmem:[%s8 + $0x24] sm:$0xf]
    %v1160 = vld [vmem:[%s8 + $0x28] sm:$0xf]
    %v1161 = vld [vmem:[%s8 + $0x2c] sm:$0xf]
    %v1162 = vld [vmem:[%s8 + $0x30] sm:$0xf]
    %v1163 = vld [vmem:[%s8 + $0x34] sm:$0xf]
    %v1164 = vld [vmem:[%s8 + $0x38] sm:$0xf]
    %v1165 = vld [vmem:[%s8 + $0x3c] sm:$0xf]
    %v1166 = vpack.c.bf16 %v197, %v197
    %v1167 = vpack.c.bf16 %v200, %v200
    %v1172 = vunpack.c.l.b16 %v1154
    %v1173 = vunpack.c.l.b16 %v1155
    %v1174 = vunpack.c.l.b16 %v1156
    %v1175 = vunpack.c.l.b16 %v1157
    %v1176 = vpack.c.b16 %v1173, %v1172
    %v1177 = vpack.c.b16 %v1175, %v1174
    %v1181 = vsel %vm148, %v1167, 0
    %1183 = vmatpush.bf16.msra.mxu0 0
    %1184 = vmatpush.bf16.msra.mxu0 0
    %1185 = vmatpush.bf16.msra.mxu0 0
    %1186 = vmatpush.bf16.msra.mxu0 0
    %1187 = vmatpush.bf16.msra.mxu0 0
    %1188 = vmatpush.bf16.msra.mxu0 0
    %1189 = vmatpush.bf16.msra.mxu0 %v1177
    %1190 = vmatpush.bf16.msra.mxu0 %v1176
    %1191 = vmatmul.bf16.gmra.mxu0 %v1181
    %v1192 = vpop.f32.mrf.mxu0
    %v1193 = vadd.f32 0.0, %v1192
    %v1194 = vpop.f32.mrf.mxu0
    %1195 = vdwg.mxu0
    %v1200 = vunpack.c.l.b16 %v1150
    %v1201 = vunpack.c.l.b16 %v1151
    %v1202 = vunpack.c.l.b16 %v1152
    %v1203 = vunpack.c.l.b16 %v1153
    %v1204 = vpack.c.b16 %v1201, %v1200
    %v1205 = vpack.c.b16 %v1203, %v1202
    %v1209 = vsel %vm148, %v1166, 0
    %1211 = vmatpush.bf16.msra.mxu0 0
    %1212 = vmatpush.bf16.msra.mxu0 0
    %1213 = vmatpush.bf16.msra.mxu0 0
    %1214 = vmatpush.bf16.msra.mxu0 0
    %1215 = vmatpush.bf16.msra.mxu0 0
    %1216 = vmatpush.bf16.msra.mxu0 0
    %1217 = vmatpush.bf16.msra.mxu0 %v1205
    %1218 = vmatpush.bf16.msra.mxu0 %v1204
    %1219 = vmatmul.bf16.gmra.mxu0 %v1209
    %v1220 = vpop.f32.mrf.mxu0
    %v1221 = vadd.f32 %v1193, %v1220
    %v1222 = vpop.f32.mrf.mxu0
    %1223 = vdwg.mxu0
    %v1224 = vpack.c.bf16 %v1149, %v1149
    %1226 = vrot.lane.b32.xlu0 %v1224, 64
    %v1227 = vpop.permute.xlu0 %1226
    %v1232 = vunpack.c.l.b16 %v1158
    %v1233 = vunpack.c.l.b16 %v1159
    %v1234 = vunpack.c.l.b16 %v1160
    %v1235 = vunpack.c.l.b16 %v1161
    %v1236 = vpack.c.b16 %v1233, %v1232
    %v1237 = vpack.c.b16 %v1235, %v1234
    %v1241 = vsel %vm148, %v1227, 0
    %1243 = vmatpush.bf16.msra.mxu0 0
    %1244 = vmatpush.bf16.msra.mxu0 0
    %1245 = vmatpush.bf16.msra.mxu0 0
    %1246 = vmatpush.bf16.msra.mxu0 0
    %1247 = vmatpush.bf16.msra.mxu0 0
    %1248 = vmatpush.bf16.msra.mxu0 0
    %1249 = vmatpush.bf16.msra.mxu0 %v1237
    %1250 = vmatpush.bf16.msra.mxu0 %v1236
    %1251 = vmatmul.bf16.gmra.mxu0 %v1241
    %v1252 = vpop.f32.mrf.mxu0
    %v1253 = vadd.f32 0.0, %v1252
    %v1254 = vpop.f32.mrf.mxu0
    %1255 = vdwg.mxu0
    %v1256 = vadd.f32 %v1221, %v1253
    %v1257 = vrot.slane %v1224, 1
    %1258 = vrot.lane.b32.xlu0 %v1257, 64
    %v1259 = vpop.permute.xlu0 %1258
    %v1264 = vunpack.c.l.b16 %v1162
    %v1265 = vunpack.c.l.b16 %v1163
    %v1266 = vunpack.c.l.b16 %v1164
    %v1267 = vunpack.c.l.b16 %v1165
    %v1268 = vpack.c.b16 %v1265, %v1264
    %v1269 = vpack.c.b16 %v1267, %v1266
    %v1273 = vsel %vm148, %v1259, 0
    %1275 = vmatpush.bf16.msra.mxu0 0
    %1276 = vmatpush.bf16.msra.mxu0 0
    %1277 = vmatpush.bf16.msra.mxu0 0
    %1278 = vmatpush.bf16.msra.mxu0 0
    %1279 = vmatpush.bf16.msra.mxu0 0
    %1280 = vmatpush.bf16.msra.mxu0 0
    %1281 = vmatpush.bf16.msra.mxu0 %v1269
    %1282 = vmatpush.bf16.msra.mxu0 %v1268
    %1283 = vmatmul.bf16.gmra.mxu0 %v1273
    %v1284 = vpop.f32.mrf.mxu0
    %v1285 = vadd.f32 0.0, %v1284
    %v1286 = vpop.f32.mrf.mxu0
    %1287 = vdwg.mxu0
    %v1288 = vadd.f32 %v1256, %v1285
    %v1289 = vld [vmem:[%s9] sm:$0x1]
    %v1291 = vperm.slane %v1289, 0
    %v1293 = vadd.f32 %v1288, %v1291
    %1294 = vst [vmem:[#allocation8] sm:$0x3] %v1293
    // Predicated region
    $region50: #{tpu_custom_call.1} parent=1 // pred_check
      _
    $region51: #{tpu_custom_call.1} parent=1 // pred_check_branch
      %1296 = sbr.rel (0) target = $region53
    $region52: #{tpu_custom_call.1} parent=1 // pred_region
      %1298 = vsyncadd [#allocation5], 0
      %s1300 = sshll.u32 [#allocation8], 4
      %s1301 = int_to_ptr.vmem [resolvable:$true] %s1300
      %s1302 = sshll.u32 %s10, 4
      %s1303 = int_to_ptr.hbm [resolvable:$true] %s1302
      %1305 = dma.vmem_to_hbm [thread:$0]  %s1301, 32, %s1303, [#allocation5]
    $region53: #{tpu_custom_call.1} parent=1 // pred_fallthru
      _
    // Predicated region
    $region54: #{tpu_custom_call.1} parent=1 // pred_check
      _
    $region55: #{tpu_custom_call.1} parent=1 // pred_check_branch
      %1307 = sbr.rel (0) target = $region57
    $region56: #{tpu_custom_call.1} parent=1 // pred_region
      %1309 = dma.done [#allocation5], 32
    $region57: #{tpu_custom_call.1} parent=1 // pred_fallthru
      _
    %1310 = vsyncpa [#allocation4], 1
    %1311 = vsyncpa [#allocation7], 1
    %1312 = vsyncpa [#allocation5], 1

</llo_original>
